<compile_context>
chip_gen: v7x
topology: tpu7x:2x2x1
jax: 0.10.0
libtpu: 0.0.40
codegen_flags: <defaults>
</compile_context>

<pallas_src>
import functools

import jax
import jax.numpy as jnp
import numpy as np
from jax.experimental import pallas as pl
from jax.experimental.pallas import tpu as pltpu


# ------------------------------ Pallas kernel -------------------------------


def _resnet_mlp_kernel(x_ref, w0_ref, wb_ref, wl_ref, bias_ref, o_ref, *,
                       num_blocks, hp, dop, unroll):
    """Fused residual-MLP forward for one batch tile.

    x_ref:    (TB, Dinp)        bf16
    w0_ref:   (Dinp, Hp)        bf16
    wb_ref:   (2*nb, Hp, Hp)    bf16  stacked [layers_1[0], layers_2[0], ...]
    wl_ref:   (Hp, Doutp)       bf16
    bias_ref: (2*nb+2, 1, BH)   f32   [b0, bb_0, ..., bb_{2nb-1}, bl]
    o_ref:    (TB, Doutp)       f32
    """
    f32 = jnp.float32
    bf16 = jnp.bfloat16

    # fc0 + activation0 (ReLU).  bf16 operands, f32 MXU accumulation.
    h = jnp.dot(x_ref[...], w0_ref[...], preferred_element_type=f32)
    h = jnp.maximum(h + bias_ref[0][:, :hp], 0.0)

    def block(i, h):
        res = h
        t = jnp.dot(h.astype(bf16), wb_ref[2 * i], preferred_element_type=f32)
        t = jnp.maximum(t + bias_ref[2 * i + 1][:, :hp], 0.0)      # layers_1[i] + act
        t = jnp.dot(t.astype(bf16), wb_ref[2 * i + 1], preferred_element_type=f32)
        t = jnp.maximum(t + bias_ref[2 * i + 2][:, :hp], 0.0)      # layers_2[i] + act
        return t + res                                             # skip connection

    if unroll:
        for i in range(num_blocks):
            h = block(i, h)
    else:
        # Deep nets: keep one block's weights/activations live at a time.
        h = jax.lax.fori_loop(0, num_blocks, block, h)

    y = jnp.dot(h.astype(bf16), wl_ref[...], preferred_element_type=f32)
    o_ref[...] = (y + bias_ref[2 * num_blocks + 1][:, :dop]).astype(o_ref.dtype)


# --------------------------------- wrapper ----------------------------------


def _round_up(n, m):
    return ((n + m - 1) // m) * m


def _cdiv(a, b):
    return -(-a // b)


def resnet_forward(x, params, *, batch_tile=256):
    """x: (B, input_dim) float32 -> (B, output_dim) float32."""
    B, Din = x.shape
    w0, b0 = params["w0"], params["b0"]
    wb, bb = params["wb"], params["bb"]
    wl, bl = params["wl"], params["bl"]
    H = w0.shape[1]
    Dout = wl.shape[1]
    nb = wb.shape[0] // 2

    # Lane-dense padded dims (multiples of 128).
    Dinp = _round_up(Din, 128)
    Hp = _round_up(H, 128)
    Doutp = _round_up(Dout, 128)
    BH = max(Hp, Doutp)

    # Batch tiling: bf16 activations pack 16 rows per sublane group.
    Bp = _round_up(max(B, 16), 16)
    TB = min(batch_tile, Bp)
    if Bp // TB < 2 and Bp >= 32:
        # v7x has 2 TensorCores: give each one a batch tile when batch permits.
        TB = _round_up(_cdiv(Bp, 2), 16)
    Bpad = _round_up(Bp, TB)
    nsteps = Bpad // TB

    # --- pack / zero-pad / cast parameters (zeros are preserved exactly) ---
    xp = jnp.pad(x, ((0, Bpad - B), (0, Dinp - Din))).astype(jnp.bfloat16)
    w0p = jnp.pad(w0, ((0, Dinp - Din), (0, Hp - H))).astype(jnp.bfloat16)
    wbp = jnp.pad(wb, ((0, 0), (0, Hp - H), (0, Hp - H))).astype(jnp.bfloat16)
    wlp = jnp.pad(wl, ((0, Hp - H), (0, Doutp - Dout))).astype(jnp.bfloat16)
    bias = jnp.concatenate(
        [jnp.pad(b0, (0, BH - H))[None],
         jnp.pad(bb, ((0, 0), (0, BH - H))),
         jnp.pad(bl, (0, BH - Dout))[None]],
        axis=0).astype(jnp.float32)[:, None, :]               # (2*nb+2, 1, BH)

    kernel = functools.partial(_resnet_mlp_kernel, num_blocks=nb, hp=Hp,
                               dop=Doutp, unroll=(nb <= 8))

    def run(single_buffer_weights):
        def const_spec(shape):
            idx = lambda i, _n=len(shape): (0,) * _n
            if single_buffer_weights:
                # Constant index_map across the grid: nothing to prefetch,
                # don't double the resident weight footprint.
                return pl.BlockSpec(shape, idx, pipeline_mode=pl.Buffered(1))
            return pl.BlockSpec(shape, idx)

        # Explicit scoped-VMEM budget: resident weights/biases (+buffers),
        # double-buffered x/out tiles, f32 activation live set, headroom.
        nbuf = 1 if single_buffer_weights else 2
        w_bytes = (Dinp * Hp + 2 * nb * Hp * Hp + Hp * Doutp) * 2     # bf16
        b_bytes = (2 * nb + 2) * BH * 4
        io_bytes = 2 * (TB * Dinp * 2 + TB * Doutp * 4)
        act_bytes = 4 * TB * Hp * 4
        vmem_limit = int(1.5 * (nbuf * (w_bytes + b_bytes) + io_bytes + act_bytes))
        vmem_limit = min(max(vmem_limit, 16 << 20), 64 << 20)         # <=64MiB (v7x-safe)

        return pl.pallas_call(
            kernel,
            out_shape=jax.ShapeDtypeStruct((Bpad, Doutp), jnp.float32),
            grid=(nsteps,),
            in_specs=[
                pl.BlockSpec((TB, Dinp), lambda i: (i, 0)),
                const_spec((Dinp, Hp)),
                const_spec((2 * nb, Hp, Hp)),
                const_spec((Hp, Doutp)),
                const_spec((2 * nb + 2, 1, BH)),
            ],
            out_specs=pl.BlockSpec((TB, Doutp), lambda i: (i, 0)),
            compiler_params=pltpu.CompilerParams(
                dimension_semantics=("parallel",),
                vmem_limit_bytes=vmem_limit),
        )(xp, w0p, wbp, wlp, bias)

    try:
        out = run(True)
    except Exception:
        # Fallback for JAX versions where single-buffered pipeline_mode is not
        # supported on the pallas_call path; identical semantics, default 2-deep
        # buffering on the constant weight blocks.
        out = run(False)

    return out[:B, :Dout]


# ------------------------------ parameter init ------------------------------


def init_params(key, input_dim, hidden_dim, hidden_layers, output_dim):
    """PyTorch nn.Linear-style init; weights stored as (in, out) = W.T."""
    assert hidden_layers % 2 == 0
    nb = hidden_layers // 2
    keys = iter(jax.random.split(key, 4 + 4 * nb))

    def uinit(k, shape, fan_in):
        bound = 1.0 / float(fan_in) ** 0.5
        return jax.random.uniform(k, shape, jnp.float32, -bound, bound)

    w0 = uinit(next(keys), (input_dim, hidden_dim), input_dim)
    b0 = uinit(next(keys), (hidden_dim,), input_dim)

    wb_list, bb_list = [], []
    for _ in range(nb):
        for _ in range(2):  # layers_1[i] then layers_2[i]
            wb_list.append(uinit(next(keys), (hidden_dim, hidden_dim), hidden_dim))
            bb_list.append(uinit(next(keys), (hidden_dim,), hidden_dim))
    wb = jnp.stack(wb_list)           # (2*nb, H, H)
    bb = jnp.stack(bb_list)           # (2*nb, H)

    wl = uinit(next(keys), (hidden_dim, output_dim), hidden_dim)
    bl = uinit(next(keys), (output_dim,), hidden_dim)
    return dict(w0=w0, b0=b0, wb=wb, bb=bb, wl=wl, bl=bl)


# ---------------------------- pure-JAX reference ----------------------------


def ref_forward(x, params):
    hp = jax.lax.Precision.HIGHEST
    h = jax.nn.relu(jnp.dot(x, params["w0"], precision=hp) + params["b0"])
    nb = params["wb"].shape[0] // 2
    for i in range(nb):
        res = h
        t = jax.nn.relu(jnp.dot(h, params["wb"][2 * i], precision=hp)
                        + params["bb"][2 * i])
        t = jax.nn.relu(jnp.dot(t, params["wb"][2 * i + 1], precision=hp)
                        + params["bb"][2 * i + 1])
        h = t + res
    return jnp.dot(h, params["wl"], precision=hp) + params["bl"]


# ----------------------------------- main ------------------------------------

if __name__ == "__main__":
    # Small shapes implied by the module: (batch, input_dim) -> (batch, output_dim)
    B, input_dim, hidden_dim, hidden_layers, output_dim = 8, 16, 32, 4, 1

    key = jax.random.PRNGKey(0)
    kx, kp = jax.random.split(key)
    x = jax.random.normal(kx, (B, input_dim), jnp.float32)
    params = init_params(kp, input_dim, hidden_dim, hidden_layers, output_dim)

    out = jax.block_until_ready(resnet_forward(x, params))

    assert out.shape == (B, output_dim), out.shape
    assert bool(jnp.all(jnp.isfinite(out)))

    # Kernel uses bf16 matmul operands with f32 accumulation (by design); the
    # reference is full-f32 HIGHEST precision, hence the loose tolerance.
    ref = ref_forward(x, params)
    np.testing.assert_allclose(np.asarray(out), np.asarray(ref),
                               rtol=5e-2, atol=5e-2)

    print("KERNEL_OK")
</pallas_src>

<mosaic_0001>
module attributes {stable_mosaic.version = 11 : i64} {
  func.func @_resnet_mlp_kernel(%arg0: i32, %arg1: memref<16x128xbf16, #tpu.memory_space<vmem>>, %arg2: memref<128x128xbf16, #tpu.memory_space<vmem>>, %arg3: memref<4x128x128xbf16, #tpu.memory_space<vmem>>, %arg4: memref<128x128xbf16, #tpu.memory_space<vmem>>, %arg5: memref<6x1x128xf32, #tpu.memory_space<vmem>>, %arg6: memref<16x128xf32, #tpu.memory_space<vmem>>) attributes {dimension_semantics = [#tpu.dimension_semantics<parallel>], iteration_bounds = array<i64: 1>, scalar_prefetch = 0 : i64, scratch_operands = 0 : i64, tpu.core_type = #tpu.core_type<tc>, window_params = [{transform_indices = @transform_0, window_bounds = array<i64: 16, 128>}, {pipeline_mode = #tpu.pipeline_mode<synchronous>, transform_indices = @transform_1, window_bounds = array<i64: 128, 128>}, {pipeline_mode = #tpu.pipeline_mode<synchronous>, transform_indices = @transform_2, window_bounds = array<i64: 4, 128, 128>}, {pipeline_mode = #tpu.pipeline_mode<synchronous>, transform_indices = @transform_3, window_bounds = array<i64: 128, 128>}, {pipeline_mode = #tpu.pipeline_mode<synchronous>, transform_indices = @transform_4, window_bounds = array<i64: 6, 1, 128>}, {transform_indices = @transform_5, window_bounds = array<i64: 16, 128>}]} {
    %c0 = arith.constant 0 : index
    %c0_0 = arith.constant 0 : index
    %0 = vector.load %arg1[%c0, %c0_0] : memref<16x128xbf16, #tpu.memory_space<vmem>>, vector<16x128xbf16>
    %c0_1 = arith.constant 0 : index
    %c0_2 = arith.constant 0 : index
    %1 = vector.load %arg2[%c0_1, %c0_2] : memref<128x128xbf16, #tpu.memory_space<vmem>>, vector<128x128xbf16>
    %cst = arith.constant dense<0.000000e+00> : vector<16x128xf32>
    %2 = tpu.matmul %0, %1, %cst {dimension_numbers = #tpu.dot_dimension_numbers<[1], [0], [0], [1], [0, 0, 1, 1], [], []>} : vector<16x128xbf16>, vector<128x128xbf16>, vector<16x128xf32> -> vector<16x128xf32>
    %c0_3 = arith.constant 0 : index
    %c0_4 = arith.constant 0 : index
    %c0_5 = arith.constant 0 : index
    %3 = vector.load %arg5[%c0_3, %c0_4, %c0_5] : memref<6x1x128xf32, #tpu.memory_space<vmem>>, vector<1x1x128xf32>
    %4 = vector.shape_cast %3 : vector<1x1x128xf32> to vector<1x128xf32>
    %5 = vector.broadcast %4 : vector<1x128xf32> to vector<16x128xf32>
    %6 = arith.addf %2, %5 : vector<16x128xf32>
    %cst_6 = arith.constant 0.000000e+00 : f32
    %7 = vector.broadcast %cst_6 : f32 to vector<16x128xf32>
    %8 = arith.maximumf %6, %7 : vector<16x128xf32>
    %9 = arith.truncf %8 : vector<16x128xf32> to vector<16x128xbf16>
    %c0_7 = arith.constant 0 : index
    %c0_8 = arith.constant 0 : index
    %c0_9 = arith.constant 0 : index
    %10 = vector.load %arg3[%c0_7, %c0_8, %c0_9] : memref<4x128x128xbf16, #tpu.memory_space<vmem>>, vector<1x128x128xbf16>
    %11 = vector.shape_cast %10 : vector<1x128x128xbf16> to vector<128x128xbf16>
    %cst_10 = arith.constant dense<0.000000e+00> : vector<16x128xf32>
    %12 = tpu.matmul %9, %11, %cst_10 {dimension_numbers = #tpu.dot_dimension_numbers<[1], [0], [0], [1], [0, 0, 1, 1], [], []>} : vector<16x128xbf16>, vector<128x128xbf16>, vector<16x128xf32> -> vector<16x128xf32>
    %c1 = arith.constant 1 : index
    %c0_11 = arith.constant 0 : index
    %c0_12 = arith.constant 0 : index
    %13 = vector.load %arg5[%c1, %c0_11, %c0_12] : memref<6x1x128xf32, #tpu.memory_space<vmem>>, vector<1x1x128xf32>
    %14 = vector.shape_cast %13 : vector<1x1x128xf32> to vector<1x128xf32>
    %15 = vector.broadcast %14 : vector<1x128xf32> to vector<16x128xf32>
    %16 = arith.addf %12, %15 : vector<16x128xf32>
    %cst_13 = arith.constant 0.000000e+00 : f32
    %17 = vector.broadcast %cst_13 : f32 to vector<16x128xf32>
    %18 = arith.maximumf %16, %17 : vector<16x128xf32>
    %19 = arith.truncf %18 : vector<16x128xf32> to vector<16x128xbf16>
    %c1_14 = arith.constant 1 : index
    %c0_15 = arith.constant 0 : index
    %c0_16 = arith.constant 0 : index
    %20 = vector.load %arg3[%c1_14, %c0_15, %c0_16] : memref<4x128x128xbf16, #tpu.memory_space<vmem>>, vector<1x128x128xbf16>
    %21 = vector.shape_cast %20 : vector<1x128x128xbf16> to vector<128x128xbf16>
    %cst_17 = arith.constant dense<0.000000e+00> : vector<16x128xf32>
    %22 = tpu.matmul %19, %21, %cst_17 {dimension_numbers = #tpu.dot_dimension_numbers<[1], [0], [0], [1], [0, 0, 1, 1], [], []>} : vector<16x128xbf16>, vector<128x128xbf16>, vector<16x128xf32> -> vector<16x128xf32>
    %c2 = arith.constant 2 : index
    %c0_18 = arith.constant 0 : index
    %c0_19 = arith.constant 0 : index
    %23 = vector.load %arg5[%c2, %c0_18, %c0_19] : memref<6x1x128xf32, #tpu.memory_space<vmem>>, vector<1x1x128xf32>
    %24 = vector.shape_cast %23 : vector<1x1x128xf32> to vector<1x128xf32>
    %25 = vector.broadcast %24 : vector<1x128xf32> to vector<16x128xf32>
    %26 = arith.addf %22, %25 : vector<16x128xf32>
    %cst_20 = arith.constant 0.000000e+00 : f32
    %27 = vector.broadcast %cst_20 : f32 to vector<16x128xf32>
    %28 = arith.maximumf %26, %27 : vector<16x128xf32>
    %29 = arith.addf %28, %8 : vector<16x128xf32>
    %30 = arith.truncf %29 : vector<16x128xf32> to vector<16x128xbf16>
    %c2_21 = arith.constant 2 : index
    %c0_22 = arith.constant 0 : index
    %c0_23 = arith.constant 0 : index
    %31 = vector.load %arg3[%c2_21, %c0_22, %c0_23] : memref<4x128x128xbf16, #tpu.memory_space<vmem>>, vector<1x128x128xbf16>
    %32 = vector.shape_cast %31 : vector<1x128x128xbf16> to vector<128x128xbf16>
    %cst_24 = arith.constant dense<0.000000e+00> : vector<16x128xf32>
    %33 = tpu.matmul %30, %32, %cst_24 {dimension_numbers = #tpu.dot_dimension_numbers<[1], [0], [0], [1], [0, 0, 1, 1], [], []>} : vector<16x128xbf16>, vector<128x128xbf16>, vector<16x128xf32> -> vector<16x128xf32>
    %c3 = arith.constant 3 : index
    %c0_25 = arith.constant 0 : index
    %c0_26 = arith.constant 0 : index
    %34 = vector.load %arg5[%c3, %c0_25, %c0_26] : memref<6x1x128xf32, #tpu.memory_space<vmem>>, vector<1x1x128xf32>
    %35 = vector.shape_cast %34 : vector<1x1x128xf32> to vector<1x128xf32>
    %36 = vector.broadcast %35 : vector<1x128xf32> to vector<16x128xf32>
    %37 = arith.addf %33, %36 : vector<16x128xf32>
    %cst_27 = arith.constant 0.000000e+00 : f32
    %38 = vector.broadcast %cst_27 : f32 to vector<16x128xf32>
    %39 = arith.maximumf %37, %38 : vector<16x128xf32>
    %40 = arith.truncf %39 : vector<16x128xf32> to vector<16x128xbf16>
    %c3_28 = arith.constant 3 : index
    %c0_29 = arith.constant 0 : index
    %c0_30 = arith.constant 0 : index
    %41 = vector.load %arg3[%c3_28, %c0_29, %c0_30] : memref<4x128x128xbf16, #tpu.memory_space<vmem>>, vector<1x128x128xbf16>
    %42 = vector.shape_cast %41 : vector<1x128x128xbf16> to vector<128x128xbf16>
    %cst_31 = arith.constant dense<0.000000e+00> : vector<16x128xf32>
    %43 = tpu.matmul %40, %42, %cst_31 {dimension_numbers = #tpu.dot_dimension_numbers<[1], [0], [0], [1], [0, 0, 1, 1], [], []>} : vector<16x128xbf16>, vector<128x128xbf16>, vector<16x128xf32> -> vector<16x128xf32>
    %c4 = arith.constant 4 : index
    %c0_32 = arith.constant 0 : index
    %c0_33 = arith.constant 0 : index
    %44 = vector.load %arg5[%c4, %c0_32, %c0_33] : memref<6x1x128xf32, #tpu.memory_space<vmem>>, vector<1x1x128xf32>
    %45 = vector.shape_cast %44 : vector<1x1x128xf32> to vector<1x128xf32>
    %46 = vector.broadcast %45 : vector<1x128xf32> to vector<16x128xf32>
    %47 = arith.addf %43, %46 : vector<16x128xf32>
    %cst_34 = arith.constant 0.000000e+00 : f32
    %48 = vector.broadcast %cst_34 : f32 to vector<16x128xf32>
    %49 = arith.maximumf %47, %48 : vector<16x128xf32>
    %50 = arith.addf %49, %29 : vector<16x128xf32>
    %51 = arith.truncf %50 : vector<16x128xf32> to vector<16x128xbf16>
    %c0_35 = arith.constant 0 : index
    %c0_36 = arith.constant 0 : index
    %52 = vector.load %arg4[%c0_35, %c0_36] : memref<128x128xbf16, #tpu.memory_space<vmem>>, vector<128x128xbf16>
    %cst_37 = arith.constant dense<0.000000e+00> : vector<16x128xf32>
    %53 = tpu.matmul %51, %52, %cst_37 {dimension_numbers = #tpu.dot_dimension_numbers<[1], [0], [0], [1], [0, 0, 1, 1], [], []>} : vector<16x128xbf16>, vector<128x128xbf16>, vector<16x128xf32> -> vector<16x128xf32>
    %c5 = arith.constant 5 : index
    %c0_38 = arith.constant 0 : index
    %c0_39 = arith.constant 0 : index
    %54 = vector.load %arg5[%c5, %c0_38, %c0_39] : memref<6x1x128xf32, #tpu.memory_space<vmem>>, vector<1x1x128xf32>
    %55 = vector.shape_cast %54 : vector<1x1x128xf32> to vector<1x128xf32>
    %56 = vector.broadcast %55 : vector<1x128xf32> to vector<16x128xf32>
    %57 = arith.addf %53, %56 : vector<16x128xf32>
    %c0_40 = arith.constant 0 : index
    %c0_41 = arith.constant 0 : index
    %58 = vector.load %arg6[%c0_40, %c0_41] : memref<16x128xf32, #tpu.memory_space<vmem>>, vector<16x128xf32>
    tpu.vector_store %arg6[%c0_40, %c0_41], %57 {strides = array<i32>} : memref<16x128xf32, #tpu.memory_space<vmem>>, vector<16x128xf32>,
    return
  }
  func.func @transform_0(%arg0: i32) -> (i32, i32) {
    %c0_i32 = arith.constant 0 : i32
    %c0_i32_0 = arith.constant 0 : i32
    return %arg0, %c0_i32 : i32, i32
  }
  func.func @transform_1(%arg0: i32) -> (i32, i32) {
    %c0_i32 = arith.constant 0 : i32
    %c0_i32_0 = arith.constant 0 : i32
    %c0_i32_1 = arith.constant 0 : i32
    return %c0_i32, %c0_i32_0 : i32, i32
  }
  func.func @transform_2(%arg0: i32) -> (i32, i32, i32) {
    %c0_i32 = arith.constant 0 : i32
    %c0_i32_0 = arith.constant 0 : i32
    %c0_i32_1 = arith.constant 0 : i32
    %c0_i32_2 = arith.constant 0 : i32
    return %c0_i32, %c0_i32_0, %c0_i32_1 : i32, i32, i32
  }
  func.func @transform_3(%arg0: i32) -> (i32, i32) {
    %c0_i32 = arith.constant 0 : i32
    %c0_i32_0 = arith.constant 0 : i32
    %c0_i32_1 = arith.constant 0 : i32
    return %c0_i32, %c0_i32_0 : i32, i32
  }
  func.func @transform_4(%arg0: i32) -> (i32, i32, i32) {
    %c0_i32 = arith.constant 0 : i32
    %c0_i32_0 = arith.constant 0 : i32
    %c0_i32_1 = arith.constant 0 : i32
    %c0_i32_2 = arith.constant 0 : i32
    return %c0_i32, %c0_i32_0, %c0_i32_1 : i32, i32, i32
  }
  func.func @transform_5(%arg0: i32) -> (i32, i32) {
    %c0_i32 = arith.constant 0 : i32
    %c0_i32_0 = arith.constant 0 : i32
    return %arg0, %c0_i32 : i32, i32
  }
}

module attributes {stable_mosaic.version = 11 : i64} {
  func.func @_resnet_mlp_kernel(%arg0: i32, %arg1: memref<16x128xbf16, #tpu.memory_space<vmem>>, %arg2: memref<128x128xbf16, #tpu.memory_space<vmem>>, %arg3: memref<4x128x128xbf16, #tpu.memory_space<vmem>>, %arg4: memref<128x128xbf16, #tpu.memory_space<vmem>>, %arg5: memref<6x1x128xf32, #tpu.memory_space<vmem>>, %arg6: memref<16x128xf32, #tpu.memory_space<vmem>>) attributes {dimension_semantics = [#tpu.dimension_semantics<parallel>], iteration_bounds = array<i64: 1>, scalar_prefetch = 0 : i64, scratch_operands = 0 : i64, tpu.core_type = #tpu.core_type<tc>, window_params = [{transform_indices = @transform_0, window_bounds = array<i64: 16, 128>}, {pipeline_mode = #tpu.pipeline_mode<synchronous>, transform_indices = @transform_1, window_bounds = array<i64: 128, 128>}, {pipeline_mode = #tpu.pipeline_mode<synchronous>, transform_indices = @transform_2, window_bounds = array<i64: 4, 128, 128>}, {pipeline_mode = #tpu.pipeline_mode<synchronous>, transform_indices = @transform_3, window_bounds = array<i64: 128, 128>}, {pipeline_mode = #tpu.pipeline_mode<synchronous>, transform_indices = @transform_4, window_bounds = array<i64: 6, 1, 128>}, {transform_indices = @transform_5, window_bounds = array<i64: 16, 128>}]} {
    %c0 = arith.constant 0 : index
    %c0_0 = arith.constant 0 : index
    %0 = vector.load %arg1[%c0, %c0_0] : memref<16x128xbf16, #tpu.memory_space<vmem>>, vector<16x128xbf16>
    %c0_1 = arith.constant 0 : index
    %c0_2 = arith.constant 0 : index
    %1 = vector.load %arg2[%c0_1, %c0_2] : memref<128x128xbf16, #tpu.memory_space<vmem>>, vector<128x128xbf16>
    %cst = arith.constant dense<0.000000e+00> : vector<16x128xf32>
    %2 = tpu.matmul %0, %1, %cst {dimension_numbers = #tpu.dot_dimension_numbers<[1], [0], [0], [1], [0, 0, 1, 1], [], []>} : vector<16x128xbf16>, vector<128x128xbf16>, vector<16x128xf32> -> vector<16x128xf32>
    %c0_3 = arith.constant 0 : index
    %c0_4 = arith.constant 0 : index
    %c0_5 = arith.constant 0 : index
    %3 = vector.load %arg5[%c0_3, %c0_4, %c0_5] : memref<6x1x128xf32, #tpu.memory_space<vmem>>, vector<1x1x128xf32>
    %4 = vector.shape_cast %3 : vector<1x1x128xf32> to vector<1x128xf32>
    %5 = vector.broadcast %4 : vector<1x128xf32> to vector<16x128xf32>
    %6 = arith.addf %2, %5 : vector<16x128xf32>
    %cst_6 = arith.constant 0.000000e+00 : f32
    %7 = vector.broadcast %cst_6 : f32 to vector<16x128xf32>
    %8 = arith.maximumf %6, %7 : vector<16x128xf32>
    %9 = arith.truncf %8 : vector<16x128xf32> to vector<16x128xbf16>
    %c0_7 = arith.constant 0 : index
    %c0_8 = arith.constant 0 : index
    %c0_9 = arith.constant 0 : index
    %10 = vector.load %arg3[%c0_7, %c0_8, %c0_9] : memref<4x128x128xbf16, #tpu.memory_space<vmem>>, vector<1x128x128xbf16>
    %11 = vector.shape_cast %10 : vector<1x128x128xbf16> to vector<128x128xbf16>
    %cst_10 = arith.constant dense<0.000000e+00> : vector<16x128xf32>
    %12 = tpu.matmul %9, %11, %cst_10 {dimension_numbers = #tpu.dot_dimension_numbers<[1], [0], [0], [1], [0, 0, 1, 1], [], []>} : vector<16x128xbf16>, vector<128x128xbf16>, vector<16x128xf32> -> vector<16x128xf32>
    %c1 = arith.constant 1 : index
    %c0_11 = arith.constant 0 : index
    %c0_12 = arith.constant 0 : index
    %13 = vector.load %arg5[%c1, %c0_11, %c0_12] : memref<6x1x128xf32, #tpu.memory_space<vmem>>, vector<1x1x128xf32>
    %14 = vector.shape_cast %13 : vector<1x1x128xf32> to vector<1x128xf32>
    %15 = vector.broadcast %14 : vector<1x128xf32> to vector<16x128xf32>
    %16 = arith.addf %12, %15 : vector<16x128xf32>
    %cst_13 = arith.constant 0.000000e+00 : f32
    %17 = vector.broadcast %cst_13 : f32 to vector<16x128xf32>
    %18 = arith.maximumf %16, %17 : vector<16x128xf32>
    %19 = arith.truncf %18 : vector<16x128xf32> to vector<16x128xbf16>
    %c1_14 = arith.constant 1 : index
    %c0_15 = arith.constant 0 : index
    %c0_16 = arith.constant 0 : index
    %20 = vector.load %arg3[%c1_14, %c0_15, %c0_16] : memref<4x128x128xbf16, #tpu.memory_space<vmem>>, vector<1x128x128xbf16>
    %21 = vector.shape_cast %20 : vector<1x128x128xbf16> to vector<128x128xbf16>
    %cst_17 = arith.constant dense<0.000000e+00> : vector<16x128xf32>
    %22 = tpu.matmul %19, %21, %cst_17 {dimension_numbers = #tpu.dot_dimension_numbers<[1], [0], [0], [1], [0, 0, 1, 1], [], []>} : vector<16x128xbf16>, vector<128x128xbf16>, vector<16x128xf32> -> vector<16x128xf32>
    %c2 = arith.constant 2 : index
    %c0_18 = arith.constant 0 : index
    %c0_19 = arith.constant 0 : index
    %23 = vector.load %arg5[%c2, %c0_18, %c0_19] : memref<6x1x128xf32, #tpu.memory_space<vmem>>, vector<1x1x128xf32>
    %24 = vector.shape_cast %23 : vector<1x1x128xf32> to vector<1x128xf32>
    %25 = vector.broadcast %24 : vector<1x128xf32> to vector<16x128xf32>
    %26 = arith.addf %22, %25 : vector<16x128xf32>
    %cst_20 = arith.constant 0.000000e+00 : f32
    %27 = vector.broadcast %cst_20 : f32 to vector<16x128xf32>
    %28 = arith.maximumf %26, %27 : vector<16x128xf32>
    %29 = arith.addf %28, %8 : vector<16x128xf32>
    %30 = arith.truncf %29 : vector<16x128xf32> to vector<16x128xbf16>
    %c2_21 = arith.constant 2 : index
    %c0_22 = arith.constant 0 : index
    %c0_23 = arith.constant 0 : index
    %31 = vector.load %arg3[%c2_21, %c0_22, %c0_23] : memref<4x128x128xbf16, #tpu.memory_space<vmem>>, vector<1x128x128xbf16>
    %32 = vector.shape_cast %31 : vector<1x128x128xbf16> to vector<128x128xbf16>
    %cst_24 = arith.constant dense<0.000000e+00> : vector<16x128xf32>
    %33 = tpu.matmul %30, %32, %cst_24 {dimension_numbers = #tpu.dot_dimension_numbers<[1], [0], [0], [1], [0, 0, 1, 1], [], []>} : vector<16x128xbf16>, vector<128x128xbf16>, vector<16x128xf32> -> vector<16x128xf32>
    %c3 = arith.constant 3 : index
    %c0_25 = arith.constant 0 : index
    %c0_26 = arith.constant 0 : index
    %34 = vector.load %arg5[%c3, %c0_25, %c0_26] : memref<6x1x128xf32, #tpu.memory_space<vmem>>, vector<1x1x128xf32>
    %35 = vector.shape_cast %34 : vector<1x1x128xf32> to vector<1x128xf32>
    %36 = vector.broadcast %35 : vector<1x128xf32> to vector<16x128xf32>
    %37 = arith.addf %33, %36 : vector<16x128xf32>
    %cst_27 = arith.constant 0.000000e+00 : f32
    %38 = vector.broadcast %cst_27 : f32 to vector<16x128xf32>
    %39 = arith.maximumf %37, %38 : vector<16x128xf32>
    %40 = arith.truncf %39 : vector<16x128xf32> to vector<16x128xbf16>
    %c3_28 = arith.constant 3 : index
    %c0_29 = arith.constant 0 : index
    %c0_30 = arith.constant 0 : index
    %41 = vector.load %arg3[%c3_28, %c0_29, %c0_30] : memref<4x128x128xbf16, #tpu.memory_space<vmem>>, vector<1x128x128xbf16>
    %42 = vector.shape_cast %41 : vector<1x128x128xbf16> to vector<128x128xbf16>
    %cst_31 = arith.constant dense<0.000000e+00> : vector<16x128xf32>
    %43 = tpu.matmul %40, %42, %cst_31 {dimension_numbers = #tpu.dot_dimension_numbers<[1], [0], [0], [1], [0, 0, 1, 1], [], []>} : vector<16x128xbf16>, vector<128x128xbf16>, vector<16x128xf32> -> vector<16x128xf32>
    %c4 = arith.constant 4 : index
    %c0_32 = arith.constant 0 : index
    %c0_33 = arith.constant 0 : index
    %44 = vector.load %arg5[%c4, %c0_32, %c0_33] : memref<6x1x128xf32, #tpu.memory_space<vmem>>, vector<1x1x128xf32>
    %45 = vector.shape_cast %44 : vector<1x1x128xf32> to vector<1x128xf32>
    %46 = vector.broadcast %45 : vector<1x128xf32> to vector<16x128xf32>
    %47 = arith.addf %43, %46 : vector<16x128xf32>
    %cst_34 = arith.constant 0.000000e+00 : f32
    %48 = vector.broadcast %cst_34 : f32 to vector<16x128xf32>
    %49 = arith.maximumf %47, %48 : vector<16x128xf32>
    %50 = arith.addf %49, %29 : vector<16x128xf32>
    %51 = arith.truncf %50 : vector<16x128xf32> to vector<16x128xbf16>
    %c0_35 = arith.constant 0 : index
    %c0_36 = arith.constant 0 : index
    %52 = vector.load %arg4[%c0_35, %c0_36] : memref<128x128xbf16, #tpu.memory_space<vmem>>, vector<128x128xbf16>
    %cst_37 = arith.constant dense<0.000000e+00> : vector<16x128xf32>
    %53 = tpu.matmul %51, %52, %cst_37 {dimension_numbers = #tpu.dot_dimension_numbers<[1], [0], [0], [1], [0, 0, 1, 1], [], []>} : vector<16x128xbf16>, vector<128x128xbf16>, vector<16x128xf32> -> vector<16x128xf32>
    %c5 = arith.constant 5 : index
    %c0_38 = arith.constant 0 : index
    %c0_39 = arith.constant 0 : index
    %54 = vector.load %arg5[%c5, %c0_38, %c0_39] : memref<6x1x128xf32, #tpu.memory_space<vmem>>, vector<1x1x128xf32>
    %55 = vector.shape_cast %54 : vector<1x1x128xf32> to vector<1x128xf32>
    %56 = vector.broadcast %55 : vector<1x128xf32> to vector<16x128xf32>
    %57 = arith.addf %53, %56 : vector<16x128xf32>
    %c0_40 = arith.constant 0 : index
    %c0_41 = arith.constant 0 : index
    %58 = vector.load %arg6[%c0_40, %c0_41] : memref<16x128xf32, #tpu.memory_space<vmem>>, vector<16x128xf32>
    tpu.vector_store %arg6[%c0_40, %c0_41], %57 {strides = array<i32>} : memref<16x128xf32, #tpu.memory_space<vmem>>, vector<16x128xf32>,
    return
  }
  func.func @transform_0(%arg0: i32) -> (i32, i32) {
    %c0_i32 = arith.constant 0 : i32
    %c0_i32_0 = arith.constant 0 : i32
    return %arg0, %c0_i32 : i32, i32
  }
  func.func @transform_1(%arg0: i32) -> (i32, i32) {
    %c0_i32 = arith.constant 0 : i32
    %c0_i32_0 = arith.constant 0 : i32
    %c0_i32_1 = arith.constant 0 : i32
    return %c0_i32, %c0_i32_0 : i32, i32
  }
  func.func @transform_2(%arg0: i32) -> (i32, i32, i32) {
    %c0_i32 = arith.constant 0 : i32
    %c0_i32_0 = arith.constant 0 : i32
    %c0_i32_1 = arith.constant 0 : i32
    %c0_i32_2 = arith.constant 0 : i32
    return %c0_i32, %c0_i32_0, %c0_i32_1 : i32, i32, i32
  }
  func.func @transform_3(%arg0: i32) -> (i32, i32) {
    %c0_i32 = arith.constant 0 : i32
    %c0_i32_0 = arith.constant 0 : i32
    %c0_i32_1 = arith.constant 0 : i32
    return %c0_i32, %c0_i32_0 : i32, i32
  }
  func.func @transform_4(%arg0: i32) -> (i32, i32, i32) {
    %c0_i32 = arith.constant 0 : i32
    %c0_i32_0 = arith.constant 0 : i32
    %c0_i32_1 = arith.constant 0 : i32
    %c0_i32_2 = arith.constant 0 : i32
    return %c0_i32, %c0_i32_0, %c0_i32_1 : i32, i32, i32
  }
  func.func @transform_5(%arg0: i32) -> (i32, i32) {
    %c0_i32 = arith.constant 0 : i32
    %c0_i32_0 = arith.constant 0 : i32
    return %arg0, %c0_i32 : i32, i32
  }
}

</mosaic_0001>

<llo_original>
// kernel: tpu_custom_call.1
$region0: #{tpu_custom_call.1}
  #allocation0 [shape = 'u32[]', space=smem, size = 0x4, offset = 0x4, fixed_abs, tag = 'smem constant byte address 0x4 - core index']
  #allocation1 [shape = 'u32[144,128]{1,0:T(1,128)}', space=vmem, size = 0x12000, scoped, tag = 'internal scratch']
  %s0 = inlined_call_operand.hbm [shape: bf16[16,128], index: 0, kind: input, shape index: {}]
  %s1 = inlined_call_operand.hbm [shape: bf16[128,128], index: 1, kind: input, shape index: {}]
  %s2 = inlined_call_operand.hbm [shape: bf16[4,128,128], index: 2, kind: input, shape index: {}]
  %s3 = inlined_call_operand.hbm [shape: bf16[128,128], index: 3, kind: input, shape index: {}]
  %s4 = inlined_call_operand.vmem [shape: f32[6,1,128], index: 4, kind: input, shape index: {}]
  %s5 = inlined_call_operand.hbm [shape: f32[16,128], index: 5, kind: output, shape index: {}]
  %s6 = sld [smem:[#allocation0]]
  $region46: #{tpu_custom_call.1} parent=0
    _
  %s8 = ssub.s32 1, %s6
  %s9 = scalar_select 0, %s8, %s6
  $region1: #{tpu_custom_call.1} parent=0
    #allocation2 [shape = 'u8[4096]{0}', space=vmem, size = 0x1000, scoped, tag = 'input window, operand 0, single buffered']
    #allocation3 [shape = 's32[1]{0}', space=sflag, size = 0x4, scoped, tag = 'scoped memory for tpu_custom_call.1']
    #allocation4 [shape = 's32[1]{0}', space=sflag, size = 0x4, scoped, tag = 'scoped memory for tpu_custom_call.1']
    #allocation5 [shape = 'u8[32768]{0}', space=vmem, size = 0x8000, scoped, tag = 'input window, operand 1, single buffered']
    #allocation6 [shape = 's32[1]{0}', space=sflag, size = 0x4, scoped, tag = 'scoped memory for tpu_custom_call.1']
    #allocation7 [shape = 'u8[131072]{0}', space=vmem, size = 0x20000, scoped, tag = 'input window, operand 2, single buffered']
    #allocation8 [shape = 'u8[32768]{0}', space=vmem, size = 0x8000, scoped, tag = 'input window, operand 3, single buffered']
    #allocation9 [shape = 's32[1]{0}', space=sflag, size = 0x4, scoped, tag = 'scoped memory for tpu_custom_call.1']
    #allocation10 [shape = 'u8[8192]{0}', space=vmem, size = 0x2000, scoped, tag = 'output window, operand 0, single buffered']
    %10 = vsyncpa [#allocation3], 0
    %11 = vsyncpa [#allocation6], 0
    %12 = vsyncpa [#allocation9], 0
    %13 = vsyncpa [#allocation4], 0
    // Predicated region
    $region2: #{tpu_custom_call.1} parent=1 // pred_check
      _
    $region3: #{tpu_custom_call.1} parent=1 // pred_check_branch
      %15 = sbr.rel (0) target = $region5
    $region4: #{tpu_custom_call.1} parent=1 // pred_region
      %s17 = ssub.s32 128, 128
      %18 = vsyncadd [#allocation3], %s17
      %s19 = sshll.u32 [#allocation2], 4
      %s20 = int_to_ptr.vmem [resolvable:$true] %s19
      %25 = dma.hbm_to_vmem [thread:$0]  %s0, 128, %s20, [#allocation3], 64, 64, 4
    $region5: #{tpu_custom_call.1} parent=1 // pred_fallthru
      _
    // Predicated region
    $region6: #{tpu_custom_call.1} parent=1 // pred_check
      _
    $region7: #{tpu_custom_call.1} parent=1 // pred_check_branch
      %27 = sbr.rel (0) target = $region9
    $region8: #{tpu_custom_call.1} parent=1 // pred_region
      %s29 = ssub.s32 1024, 1024
      %30 = vsyncadd [#allocation6], %s29
      %s31 = sshll.u32 [#allocation5], 4
      %s32 = int_to_ptr.vmem [resolvable:$true] %s31
      %37 = dma.hbm_to_vmem [thread:$0]  %s1, 1024, %s32, [#allocation6], 64, 64, 4
    $region9: #{tpu_custom_call.1} parent=1 // pred_fallthru
      _
    // Predicated region
    $region10: #{tpu_custom_call.1} parent=1 // pred_check
      _
    $region11: #{tpu_custom_call.1} parent=1 // pred_check_branch
      %39 = sbr.rel (0) target = $region13
    $region12: #{tpu_custom_call.1} parent=1 // pred_region
      %s41 = ssub.s32 4096, 4096
      %42 = vsyncadd [#allocation6], %s41
      %s43 = sshll.u32 [#allocation7], 4
      %s44 = int_to_ptr.vmem [resolvable:$true] %s43
      %49 = dma.hbm_to_vmem [thread:$0]  %s2, 4096, %s44, [#allocation6], 64, 64, 4
    $region13: #{tpu_custom_call.1} parent=1 // pred_fallthru
      _
    // Predicated region
    $region14: #{tpu_custom_call.1} parent=1 // pred_check
      _
    $region15: #{tpu_custom_call.1} parent=1 // pred_check_branch
      %51 = sbr.rel (0) target = $region17
    $region16: #{tpu_custom_call.1} parent=1 // pred_region
      %s53 = ssub.s32 1024, 1024
      %54 = vsyncadd [#allocation9], %s53
      %s55 = sshll.u32 [#allocation8], 4
      %s56 = int_to_ptr.vmem [resolvable:$true] %s55
      %61 = dma.hbm_to_vmem [thread:$0]  %s3, 1024, %s56, [#allocation9], 64, 64, 4
    $region17: #{tpu_custom_call.1} parent=1 // pred_fallthru
      _
    // Predicated region
    $region18: #{tpu_custom_call.1} parent=1 // pred_check
      _
    $region19: #{tpu_custom_call.1} parent=1 // pred_check_branch
      %63 = sbr.rel (0) target = $region21
    $region20: #{tpu_custom_call.1} parent=1 // pred_region
      _
    $region21: #{tpu_custom_call.1} parent=1 // pred_fallthru
      _
    // Predicated region
    $region22: #{tpu_custom_call.1} parent=1 // pred_check
      _
    $region23: #{tpu_custom_call.1} parent=1 // pred_check_branch
      %65 = sbr.rel (0) target = $region25
    $region24: #{tpu_custom_call.1} parent=1 // pred_region
      %66 = dma.done [#allocation3], 128
    $region25: #{tpu_custom_call.1} parent=1 // pred_fallthru
      _
    // Predicated region
    $region26: #{tpu_custom_call.1} parent=1 // pred_check
      _
    $region27: #{tpu_custom_call.1} parent=1 // pred_check_branch
      %68 = sbr.rel (0) target = $region29
    $region28: #{tpu_custom_call.1} parent=1 // pred_region
      %69 = dma.done [#allocation6], 1024
    $region29: #{tpu_custom_call.1} parent=1 // pred_fallthru
      _
    // Predicated region
    $region30: #{tpu_custom_call.1} parent=1 // pred_check
      _
    $region31: #{tpu_custom_call.1} parent=1 // pred_check_branch
      %71 = sbr.rel (0) target = $region33
    $region32: #{tpu_custom_call.1} parent=1 // pred_region
      %72 = dma.done [#allocation6], 4096
    $region33: #{tpu_custom_call.1} parent=1 // pred_fallthru
      _
    // Predicated region
    $region34: #{tpu_custom_call.1} parent=1 // pred_check
      _
    $region35: #{tpu_custom_call.1} parent=1 // pred_check_branch
      %74 = sbr.rel (0) target = $region37
    $region36: #{tpu_custom_call.1} parent=1 // pred_region
      %75 = dma.done [#allocation9], 1024
    $region37: #{tpu_custom_call.1} parent=1 // pred_fallthru
      _
    %v77 = vld [vmem:[#allocation2] sm:$0xf]
    %v78 = vld [vmem:[#allocation2 + $0x4] sm:$0xf]
    %v79 = vld [vmem:[#allocation5] sm:$0xf]
    %v80 = vld [vmem:[#allocation5 + $0x4] sm:$0xf]
    %v81 = vld [vmem:[#allocation5 + $0x8] sm:$0xf]
    %v82 = vld [vmem:[#allocation5 + $0xc] sm:$0xf]
    %v83 = vld [vmem:[#allocation5 + $0x10] sm:$0xf]
    %v84 = vld [vmem:[#allocation5 + $0x14] sm:$0xf]
    %v85 = vld [vmem:[#allocation5 + $0x18] sm:$0xf]
    %v86 = vld [vmem:[#allocation5 + $0x1c] sm:$0xf]
    %v87 = vld [vmem:[#allocation5 + $0x20] sm:$0xf]
    %v88 = vld [vmem:[#allocation5 + $0x24] sm:$0xf]
    %v89 = vld [vmem:[#allocation5 + $0x28] sm:$0xf]
    %v90 = vld [vmem:[#allocation5 + $0x2c] sm:$0xf]
    %v91 = vld [vmem:[#allocation5 + $0x30] sm:$0xf]
    %v92 = vld [vmem:[#allocation5 + $0x34] sm:$0xf]
    %v93 = vld [vmem:[#allocation5 + $0x38] sm:$0xf]
    %v94 = vld [vmem:[#allocation5 + $0x3c] sm:$0xf]
    %v95 = vld [vmem:[%s4] sm:$0x1]
    %v97 = vlaneseq
    %v98 = vshrl.u32 %v97, 7
    %v99 = vsub.s32 0, %v98
    %v100 = vrot.slane %v95, %v99
    %v104 = vunpack.c.l.b16 %v77
    %v105 = vunpack.c.l.b16 %v78
    %v106 = vpack.c.b16 %v105, %v104
    %v124 = vunpack.c.l.b16 %v79
    %v125 = vunpack.c.l.b16 %v80
    %v126 = vunpack.c.l.b16 %v81
    %v127 = vunpack.c.l.b16 %v82
    %v128 = vunpack.c.l.b16 %v83
    %v129 = vunpack.c.l.b16 %v84
    %v130 = vunpack.c.l.b16 %v85
    %v131 = vunpack.c.l.b16 %v86
    %v132 = vunpack.c.l.b16 %v87
    %v133 = vunpack.c.l.b16 %v88
    %v134 = vunpack.c.l.b16 %v89
    %v135 = vunpack.c.l.b16 %v90
    %v136 = vunpack.c.l.b16 %v91
    %v137 = vunpack.c.l.b16 %v92
    %v138 = vunpack.c.l.b16 %v93
    %v139 = vunpack.c.l.b16 %v94
    %v140 = vpack.c.b16 %v125, %v124
    %v141 = vpack.c.b16 %v127, %v126
    %v142 = vpack.c.b16 %v129, %v128
    %v143 = vpack.c.b16 %v131, %v130
    %v144 = vpack.c.b16 %v133, %v132
    %v145 = vpack.c.b16 %v135, %v134
    %v146 = vpack.c.b16 %v137, %v136
    %v147 = vpack.c.b16 %v139, %v138
    %156 = vmatprep.subr.bf16.mxu0 0
    %157 = vmatpush1.bf16.msra.mxu0 %v140
    %158 = vmatprep.subr.bf16.mxu0 0
    %159 = vmatpush1.bf16.msra.mxu0 %v141
    %160 = vmatprep.subr.bf16.mxu0 0
    %161 = vmatpush1.bf16.msra.mxu0 %v142
    %162 = vmatprep.subr.bf16.mxu0 0
    %163 = vmatpush1.bf16.msra.mxu0 %v143
    %164 = vmatprep.subr.bf16.mxu0 0
    %165 = vmatpush1.bf16.msra.mxu0 %v144
    %166 = vmatprep.subr.bf16.mxu0 0
    %167 = vmatpush1.bf16.msra.mxu0 %v145
    %168 = vmatprep.subr.bf16.mxu0 0
    %169 = vmatpush1.bf16.msra.mxu0 %v146
    %170 = vmatprep.subr.bf16.mxu0 0
    %171 = vmatpush1.bf16.msra.mxu0 %v147
    %172 = vmatprep.subr.bf16.mxu0 0
    %173 = vmatpush1.bf16.msra.mxu0 0
    %174 = vmatprep.subr.bf16.mxu0 0
    %175 = vmatpush1.bf16.msra.mxu0 0
    %176 = vmatprep.subr.bf16.mxu0 0
    %177 = vmatpush1.bf16.msra.mxu0 0
    %178 = vmatprep.subr.bf16.mxu0 0
    %179 = vmatpush1.bf16.msra.mxu0 0
    %180 = vmatprep.subr.bf16.mxu0 0
    %181 = vmatpush1.bf16.msra.mxu0 0
    %182 = vmatprep.subr.bf16.mxu0 0
    %183 = vmatpush1.bf16.msra.mxu0 0
    %184 = vmatprep.subr.bf16.mxu0 0
    %185 = vmatpush1.bf16.msra.mxu0 0
    %186 = vmatprep.subr.bf16.mxu0 0
    %187 = vmatpush1.bf16.msra.mxu0 0
    %188 = vmatprep.mubr.bf16.mxu0 0
    %189 = vmatmul.mubr.bf16.gmra.mrb[0].mxu0 %v106
    %v190 = vpop.f32.mrb[0].mxu0
    %v191 = vadd.f32 %v100, %v190
    %v192 = vpop.f32.mrb[0].mxu0
    %v193 = vpop.f32.mrb[0].mxu0
    %v194 = vadd.f32 %v100, %v193
    %v195 = vpop.f32.mrb[0].mxu0
    %196 = vdwg.mxu0
    %v197 = vmax.f32 %v191, 0.0
    %v198 = vmax.f32 %v194, 0.0
    %v199 = vpack.c.bf16 %v198, %v197
    %v200 = vld [vmem:[#allocation7] sm:$0xf]
    %v201 = vld [vmem:[#allocation7 + $0x4] sm:$0xf]
    %v202 = vld [vmem:[#allocation7 + $0x8] sm:$0xf]
    %v203 = vld [vmem:[#allocation7 + $0xc] sm:$0xf]
    %v204 = vld [vmem:[#allocation7 + $0x10] sm:$0xf]
    %v205 = vld [vmem:[#allocation7 + $0x14] sm:$0xf]
    %v206 = vld [vmem:[#allocation7 + $0x18] sm:$0xf]
    %v207 = vld [vmem:[#allocation7 + $0x1c] sm:$0xf]
    %v208 = vld [vmem:[#allocation7 + $0x20] sm:$0xf]
    %v209 = vld [vmem:[#allocation7 + $0x24] sm:$0xf]
    %v210 = vld [vmem:[#allocation7 + $0x28] sm:$0xf]
    %v211 = vld [vmem:[#allocation7 + $0x2c] sm:$0xf]
    %v212 = vld [vmem:[#allocation7 + $0x30] sm:$0xf]
    %v213 = vld [vmem:[#allocation7 + $0x34] sm:$0xf]
    %v214 = vld [vmem:[#allocation7 + $0x38] sm:$0xf]
    %v215 = vld [vmem:[#allocation7 + $0x3c] sm:$0xf]
    %s216 = scalar_lea.vmem %s4, 1
    %v217 = vld [vmem:[%s216] sm:$0x1]
    %v219 = vlaneseq
    %v220 = vshrl.u32 %v219, 7
    %v221 = vsub.s32 0, %v220
    %v222 = vrot.slane %v217, %v221
    %v240 = vunpack.c.l.b16 %v200
    %v241 = vunpack.c.l.b16 %v201
    %v242 = vunpack.c.l.b16 %v202
    %v243 = vunpack.c.l.b16 %v203
    %v244 = vunpack.c.l.b16 %v204
    %v245 = vunpack.c.l.b16 %v205
    %v246 = vunpack.c.l.b16 %v206
    %v247 = vunpack.c.l.b16 %v207
    %v248 = vunpack.c.l.b16 %v208
    %v249 = vunpack.c.l.b16 %v209
    %v250 = vunpack.c.l.b16 %v210
    %v251 = vunpack.c.l.b16 %v211
    %v252 = vunpack.c.l.b16 %v212
    %v253 = vunpack.c.l.b16 %v213
    %v254 = vunpack.c.l.b16 %v214
    %v255 = vunpack.c.l.b16 %v215
    %v256 = vpack.c.b16 %v241, %v240
    %v257 = vpack.c.b16 %v243, %v242
    %v258 = vpack.c.b16 %v245, %v244
    %v259 = vpack.c.b16 %v247, %v246
    %v260 = vpack.c.b16 %v249, %v248
    %v261 = vpack.c.b16 %v251, %v250
    %v262 = vpack.c.b16 %v253, %v252
    %v263 = vpack.c.b16 %v255, %v254
    %272 = vmatprep.subr.bf16.mxu0 0
    %273 = vmatpush1.bf16.msra.mxu0 %v256
    %274 = vmatprep.subr.bf16.mxu0 0
    %275 = vmatpush1.bf16.msra.mxu0 %v257
    %276 = vmatprep.subr.bf16.mxu0 0
    %277 = vmatpush1.bf16.msra.mxu0 %v258
    %278 = vmatprep.subr.bf16.mxu0 0
    %279 = vmatpush1.bf16.msra.mxu0 %v259
    %280 = vmatprep.subr.bf16.mxu0 0
    %281 = vmatpush1.bf16.msra.mxu0 %v260
    %282 = vmatprep.subr.bf16.mxu0 0
    %283 = vmatpush1.bf16.msra.mxu0 %v261
    %284 = vmatprep.subr.bf16.mxu0 0
    %285 = vmatpush1.bf16.msra.mxu0 %v262
    %286 = vmatprep.subr.bf16.mxu0 0
    %287 = vmatpush1.bf16.msra.mxu0 %v263
    %288 = vmatprep.subr.bf16.mxu0 0
    %289 = vmatpush1.bf16.msra.mxu0 0
    %290 = vmatprep.subr.bf16.mxu0 0
    %291 = vmatpush1.bf16.msra.mxu0 0
    %292 = vmatprep.subr.bf16.mxu0 0
    %293 = vmatpush1.bf16.msra.mxu0 0
    %294 = vmatprep.subr.bf16.mxu0 0
    %295 = vmatpush1.bf16.msra.mxu0 0
    %296 = vmatprep.subr.bf16.mxu0 0
    %297 = vmatpush1.bf16.msra.mxu0 0
    %298 = vmatprep.subr.bf16.mxu0 0
    %299 = vmatpush1.bf16.msra.mxu0 0
    %300 = vmatprep.subr.bf16.mxu0 0
    %301 = vmatpush1.bf16.msra.mxu0 0
    %302 = vmatprep.subr.bf16.mxu0 0
    %303 = vmatpush1.bf16.msra.mxu0 0
    %304 = vmatprep.mubr.bf16.mxu0 0
    %305 = vmatmul.mubr.bf16.gmra.mrb[0].mxu0 %v199
    %v306 = vpop.f32.mrb[0].mxu0
    %v307 = vadd.f32 %v222, %v306
    %v308 = vpop.f32.mrb[0].mxu0
    %v309 = vpop.f32.mrb[0].mxu0
    %v310 = vadd.f32 %v222, %v309
    %v311 = vpop.f32.mrb[0].mxu0
    %312 = vdwg.mxu0
    %v313 = vmax.f32 %v307, 0.0
    %v314 = vmax.f32 %v310, 0.0
    %v315 = vpack.c.bf16 %v314, %v313
    %s316 = scalar_lea.vmem [#allocation7], 64
    %v317 = vld [vmem:[%s316] sm:$0xf]
    %v318 = vld [vmem:[%s316 + $0x4] sm:$0xf]
    %v319 = vld [vmem:[%s316 + $0x8] sm:$0xf]
    %v320 = vld [vmem:[%s316 + $0xc] sm:$0xf]
    %v321 = vld [vmem:[%s316 + $0x10] sm:$0xf]
    %v322 = vld [vmem:[%s316 + $0x14] sm:$0xf]
    %v323 = vld [vmem:[%s316 + $0x18] sm:$0xf]
    %v324 = vld [vmem:[%s316 + $0x1c] sm:$0xf]
    %v325 = vld [vmem:[%s316 + $0x20] sm:$0xf]
    %v326 = vld [vmem:[%s316 + $0x24] sm:$0xf]
    %v327 = vld [vmem:[%s316 + $0x28] sm:$0xf]
    %v328 = vld [vmem:[%s316 + $0x2c] sm:$0xf]
    %v329 = vld [vmem:[%s316 + $0x30] sm:$0xf]
    %v330 = vld [vmem:[%s316 + $0x34] sm:$0xf]
    %v331 = vld [vmem:[%s316 + $0x38] sm:$0xf]
    %v332 = vld [vmem:[%s316 + $0x3c] sm:$0xf]
    %s333 = scalar_lea.vmem %s4, 2
    %v334 = vld [vmem:[%s333] sm:$0x1]
    %v336 = vlaneseq
    %v337 = vshrl.u32 %v336, 7
    %v338 = vsub.s32 0, %v337
    %v339 = vrot.slane %v334, %v338
    %v357 = vunpack.c.l.b16 %v317
    %v358 = vunpack.c.l.b16 %v318
    %v359 = vunpack.c.l.b16 %v319
    %v360 = vunpack.c.l.b16 %v320
    %v361 = vunpack.c.l.b16 %v321
    %v362 = vunpack.c.l.b16 %v322
    %v363 = vunpack.c.l.b16 %v323
    %v364 = vunpack.c.l.b16 %v324
    %v365 = vunpack.c.l.b16 %v325
    %v366 = vunpack.c.l.b16 %v326
    %v367 = vunpack.c.l.b16 %v327
    %v368 = vunpack.c.l.b16 %v328
    %v369 = vunpack.c.l.b16 %v329
    %v370 = vunpack.c.l.b16 %v330
    %v371 = vunpack.c.l.b16 %v331
    %v372 = vunpack.c.l.b16 %v332
    %v373 = vpack.c.b16 %v358, %v357
    %v374 = vpack.c.b16 %v360, %v359
    %v375 = vpack.c.b16 %v362, %v361
    %v376 = vpack.c.b16 %v364, %v363
    %v377 = vpack.c.b16 %v366, %v365
    %v378 = vpack.c.b16 %v368, %v367
    %v379 = vpack.c.b16 %v370, %v369
    %v380 = vpack.c.b16 %v372, %v371
    %389 = vmatprep.subr.bf16.mxu0 0
    %390 = vmatpush1.bf16.msra.mxu0 %v373
    %391 = vmatprep.subr.bf16.mxu0 0
    %392 = vmatpush1.bf16.msra.mxu0 %v374
    %393 = vmatprep.subr.bf16.mxu0 0
    %394 = vmatpush1.bf16.msra.mxu0 %v375
    %395 = vmatprep.subr.bf16.mxu0 0
    %396 = vmatpush1.bf16.msra.mxu0 %v376
    %397 = vmatprep.subr.bf16.mxu0 0
    %398 = vmatpush1.bf16.msra.mxu0 %v377
    %399 = vmatprep.subr.bf16.mxu0 0
    %400 = vmatpush1.bf16.msra.mxu0 %v378
    %401 = vmatprep.subr.bf16.mxu0 0
    %402 = vmatpush1.bf16.msra.mxu0 %v379
    %403 = vmatprep.subr.bf16.mxu0 0
    %404 = vmatpush1.bf16.msra.mxu0 %v380
    %405 = vmatprep.subr.bf16.mxu0 0
    %406 = vmatpush1.bf16.msra.mxu0 0
    %407 = vmatprep.subr.bf16.mxu0 0
    %408 = vmatpush1.bf16.msra.mxu0 0
    %409 = vmatprep.subr.bf16.mxu0 0
    %410 = vmatpush1.bf16.msra.mxu0 0
    %411 = vmatprep.subr.bf16.mxu0 0
    %412 = vmatpush1.bf16.msra.mxu0 0
    %413 = vmatprep.subr.bf16.mxu0 0
    %414 = vmatpush1.bf16.msra.mxu0 0
    %415 = vmatprep.subr.bf16.mxu0 0
    %416 = vmatpush1.bf16.msra.mxu0 0
    %417 = vmatprep.subr.bf16.mxu0 0
    %418 = vmatpush1.bf16.msra.mxu0 0
    %419 = vmatprep.subr.bf16.mxu0 0
    %420 = vmatpush1.bf16.msra.mxu0 0
    %421 = vmatprep.mubr.bf16.mxu0 0
    %422 = vmatmul.mubr.bf16.gmra.mrb[0].mxu0 %v315
    %v423 = vpop.f32.mrb[0].mxu0
    %v424 = vadd.f32 %v339, %v423
    %v425 = vpop.f32.mrb[0].mxu0
    %v426 = vpop.f32.mrb[0].mxu0
    %v427 = vadd.f32 %v339, %v426
    %v428 = vpop.f32.mrb[0].mxu0
    %429 = vdwg.mxu0
    %v430 = vmax.f32 %v424, 0.0
    %v431 = vmax.f32 %v427, 0.0
    %v432 = vadd.f32 %v430, %v197
    %v433 = vadd.f32 %v431, %v198
    %v434 = vpack.c.bf16 %v433, %v432
    %s435 = scalar_lea.vmem [#allocation7], 128
    %v436 = vld [vmem:[%s435] sm:$0xf]
    %v437 = vld [vmem:[%s435 + $0x4] sm:$0xf]
    %v438 = vld [vmem:[%s435 + $0x8] sm:$0xf]
    %v439 = vld [vmem:[%s435 + $0xc] sm:$0xf]
    %v440 = vld [vmem:[%s435 + $0x10] sm:$0xf]
    %v441 = vld [vmem:[%s435 + $0x14] sm:$0xf]
    %v442 = vld [vmem:[%s435 + $0x18] sm:$0xf]
    %v443 = vld [vmem:[%s435 + $0x1c] sm:$0xf]
    %v444 = vld [vmem:[%s435 + $0x20] sm:$0xf]
    %v445 = vld [vmem:[%s435 + $0x24] sm:$0xf]
    %v446 = vld [vmem:[%s435 + $0x28] sm:$0xf]
    %v447 = vld [vmem:[%s435 + $0x2c] sm:$0xf]
    %v448 = vld [vmem:[%s435 + $0x30] sm:$0xf]
    %v449 = vld [vmem:[%s435 + $0x34] sm:$0xf]
    %v450 = vld [vmem:[%s435 + $0x38] sm:$0xf]
    %v451 = vld [vmem:[%s435 + $0x3c] sm:$0xf]
    %s452 = scalar_lea.vmem %s4, 3
    %v453 = vld [vmem:[%s452] sm:$0x1]
    %v455 = vlaneseq
    %v456 = vshrl.u32 %v455, 7
    %v457 = vsub.s32 0, %v456
    %v458 = vrot.slane %v453, %v457
    %v476 = vunpack.c.l.b16 %v436
    %v477 = vunpack.c.l.b16 %v437
    %v478 = vunpack.c.l.b16 %v438
    %v479 = vunpack.c.l.b16 %v439
    %v480 = vunpack.c.l.b16 %v440
    %v481 = vunpack.c.l.b16 %v441
    %v482 = vunpack.c.l.b16 %v442
    %v483 = vunpack.c.l.b16 %v443
    %v484 = vunpack.c.l.b16 %v444
    %v485 = vunpack.c.l.b16 %v445
    %v486 = vunpack.c.l.b16 %v446
    %v487 = vunpack.c.l.b16 %v447
    %v488 = vunpack.c.l.b16 %v448
    %v489 = vunpack.c.l.b16 %v449
    %v490 = vunpack.c.l.b16 %v450
    %v491 = vunpack.c.l.b16 %v451
    %v492 = vpack.c.b16 %v477, %v476
    %v493 = vpack.c.b16 %v479, %v478
    %v494 = vpack.c.b16 %v481, %v480
    %v495 = vpack.c.b16 %v483, %v482
    %v496 = vpack.c.b16 %v485, %v484
    %v497 = vpack.c.b16 %v487, %v486
    %v498 = vpack.c.b16 %v489, %v488
    %v499 = vpack.c.b16 %v491, %v490
    %508 = vmatprep.subr.bf16.mxu0 0
    %509 = vmatpush1.bf16.msra.mxu0 %v492
    %510 = vmatprep.subr.bf16.mxu0 0
    %511 = vmatpush1.bf16.msra.mxu0 %v493
    %512 = vmatprep.subr.bf16.mxu0 0
    %513 = vmatpush1.bf16.msra.mxu0 %v494
    %514 = vmatprep.subr.bf16.mxu0 0
    %515 = vmatpush1.bf16.msra.mxu0 %v495
    %516 = vmatprep.subr.bf16.mxu0 0
    %517 = vmatpush1.bf16.msra.mxu0 %v496
    %518 = vmatprep.subr.bf16.mxu0 0
    %519 = vmatpush1.bf16.msra.mxu0 %v497
    %520 = vmatprep.subr.bf16.mxu0 0
    %521 = vmatpush1.bf16.msra.mxu0 %v498
    %522 = vmatprep.subr.bf16.mxu0 0
    %523 = vmatpush1.bf16.msra.mxu0 %v499
    %524 = vmatprep.subr.bf16.mxu0 0
    %525 = vmatpush1.bf16.msra.mxu0 0
    %526 = vmatprep.subr.bf16.mxu0 0
    %527 = vmatpush1.bf16.msra.mxu0 0
    %528 = vmatprep.subr.bf16.mxu0 0
    %529 = vmatpush1.bf16.msra.mxu0 0
    %530 = vmatprep.subr.bf16.mxu0 0
    %531 = vmatpush1.bf16.msra.mxu0 0
    %532 = vmatprep.subr.bf16.mxu0 0
    %533 = vmatpush1.bf16.msra.mxu0 0
    %534 = vmatprep.subr.bf16.mxu0 0
    %535 = vmatpush1.bf16.msra.mxu0 0
    %536 = vmatprep.subr.bf16.mxu0 0
    %537 = vmatpush1.bf16.msra.mxu0 0
    %538 = vmatprep.subr.bf16.mxu0 0
    %539 = vmatpush1.bf16.msra.mxu0 0
    %540 = vmatprep.mubr.bf16.mxu0 0
    %541 = vmatmul.mubr.bf16.gmra.mrb[0].mxu0 %v434
    %v542 = vpop.f32.mrb[0].mxu0
    %v543 = vadd.f32 %v458, %v542
    %v544 = vpop.f32.mrb[0].mxu0
    %v545 = vpop.f32.mrb[0].mxu0
    %v546 = vadd.f32 %v458, %v545
    %v547 = vpop.f32.mrb[0].mxu0
    %548 = vdwg.mxu0
    %v549 = vmax.f32 %v543, 0.0
    %v550 = vmax.f32 %v546, 0.0
    %v551 = vpack.c.bf16 %v550, %v549
    %s552 = scalar_lea.vmem [#allocation7], 192
    %v553 = vld [vmem:[%s552] sm:$0xf]
    %v554 = vld [vmem:[%s552 + $0x4] sm:$0xf]
    %v555 = vld [vmem:[%s552 + $0x8] sm:$0xf]
    %v556 = vld [vmem:[%s552 + $0xc] sm:$0xf]
    %v557 = vld [vmem:[%s552 + $0x10] sm:$0xf]
    %v558 = vld [vmem:[%s552 + $0x14] sm:$0xf]
    %v559 = vld [vmem:[%s552 + $0x18] sm:$0xf]
    %v560 = vld [vmem:[%s552 + $0x1c] sm:$0xf]
    %v561 = vld [vmem:[%s552 + $0x20] sm:$0xf]
    %v562 = vld [vmem:[%s552 + $0x24] sm:$0xf]
    %v563 = vld [vmem:[%s552 + $0x28] sm:$0xf]
    %v564 = vld [vmem:[%s552 + $0x2c] sm:$0xf]
    %v565 = vld [vmem:[%s552 + $0x30] sm:$0xf]
    %v566 = vld [vmem:[%s552 + $0x34] sm:$0xf]
    %v567 = vld [vmem:[%s552 + $0x38] sm:$0xf]
    %v568 = vld [vmem:[%s552 + $0x3c] sm:$0xf]
    %s569 = scalar_lea.vmem %s4, 4
    %v570 = vld [vmem:[%s569] sm:$0x1]
    %v572 = vlaneseq
    %v573 = vshrl.u32 %v572, 7
    %v574 = vsub.s32 0, %v573
    %v575 = vrot.slane %v570, %v574
    %v593 = vunpack.c.l.b16 %v553
    %v594 = vunpack.c.l.b16 %v554
    %v595 = vunpack.c.l.b16 %v555
    %v596 = vunpack.c.l.b16 %v556
    %v597 = vunpack.c.l.b16 %v557
    %v598 = vunpack.c.l.b16 %v558
    %v599 = vunpack.c.l.b16 %v559
    %v600 = vunpack.c.l.b16 %v560
    %v601 = vunpack.c.l.b16 %v561
    %v602 = vunpack.c.l.b16 %v562
    %v603 = vunpack.c.l.b16 %v563
    %v604 = vunpack.c.l.b16 %v564
    %v605 = vunpack.c.l.b16 %v565
    %v606 = vunpack.c.l.b16 %v566
    %v607 = vunpack.c.l.b16 %v567
    %v608 = vunpack.c.l.b16 %v568
    %v609 = vpack.c.b16 %v594, %v593
    %v610 = vpack.c.b16 %v596, %v595
    %v611 = vpack.c.b16 %v598, %v597
    %v612 = vpack.c.b16 %v600, %v599
    %v613 = vpack.c.b16 %v602, %v601
    %v614 = vpack.c.b16 %v604, %v603
    %v615 = vpack.c.b16 %v606, %v605
    %v616 = vpack.c.b16 %v608, %v607
    %625 = vmatprep.subr.bf16.mxu0 0
    %626 = vmatpush1.bf16.msra.mxu0 %v609
    %627 = vmatprep.subr.bf16.mxu0 0
    %628 = vmatpush1.bf16.msra.mxu0 %v610
    %629 = vmatprep.subr.bf16.mxu0 0
    %630 = vmatpush1.bf16.msra.mxu0 %v611
    %631 = vmatprep.subr.bf16.mxu0 0
    %632 = vmatpush1.bf16.msra.mxu0 %v612
    %633 = vmatprep.subr.bf16.mxu0 0
    %634 = vmatpush1.bf16.msra.mxu0 %v613
    %635 = vmatprep.subr.bf16.mxu0 0
    %636 = vmatpush1.bf16.msra.mxu0 %v614
    %637 = vmatprep.subr.bf16.mxu0 0
    %638 = vmatpush1.bf16.msra.mxu0 %v615
    %639 = vmatprep.subr.bf16.mxu0 0
    %640 = vmatpush1.bf16.msra.mxu0 %v616
    %641 = vmatprep.subr.bf16.mxu0 0
    %642 = vmatpush1.bf16.msra.mxu0 0
    %643 = vmatprep.subr.bf16.mxu0 0
    %644 = vmatpush1.bf16.msra.mxu0 0
    %645 = vmatprep.subr.bf16.mxu0 0
    %646 = vmatpush1.bf16.msra.mxu0 0
    %647 = vmatprep.subr.bf16.mxu0 0
    %648 = vmatpush1.bf16.msra.mxu0 0
    %649 = vmatprep.subr.bf16.mxu0 0
    %650 = vmatpush1.bf16.msra.mxu0 0
    %651 = vmatprep.subr.bf16.mxu0 0
    %652 = vmatpush1.bf16.msra.mxu0 0
    %653 = vmatprep.subr.bf16.mxu0 0
    %654 = vmatpush1.bf16.msra.mxu0 0
    %655 = vmatprep.subr.bf16.mxu0 0
    %656 = vmatpush1.bf16.msra.mxu0 0
    %657 = vmatprep.mubr.bf16.mxu0 0
    %658 = vmatmul.mubr.bf16.gmra.mrb[0].mxu0 %v551
    %v659 = vpop.f32.mrb[0].mxu0
    %v660 = vadd.f32 %v575, %v659
    %v661 = vpop.f32.mrb[0].mxu0
    %v662 = vpop.f32.mrb[0].mxu0
    %v663 = vadd.f32 %v575, %v662
    %v664 = vpop.f32.mrb[0].mxu0
    %665 = vdwg.mxu0
    %v666 = vmax.f32 %v660, 0.0
    %v667 = vmax.f32 %v663, 0.0
    %v668 = vadd.f32 %v666, %v432
    %v669 = vadd.f32 %v667, %v433
    %v670 = vpack.c.bf16 %v669, %v668
    %v671 = vld [vmem:[#allocation8] sm:$0xf]
    %v672 = vld [vmem:[#allocation8 + $0x4] sm:$0xf]
    %v673 = vld [vmem:[#allocation8 + $0x8] sm:$0xf]
    %v674 = vld [vmem:[#allocation8 + $0xc] sm:$0xf]
    %v675 = vld [vmem:[#allocation8 + $0x10] sm:$0xf]
    %v676 = vld [vmem:[#allocation8 + $0x14] sm:$0xf]
    %v677 = vld [vmem:[#allocation8 + $0x18] sm:$0xf]
    %v678 = vld [vmem:[#allocation8 + $0x1c] sm:$0xf]
    %v679 = vld [vmem:[#allocation8 + $0x20] sm:$0xf]
    %v680 = vld [vmem:[#allocation8 + $0x24] sm:$0xf]
    %v681 = vld [vmem:[#allocation8 + $0x28] sm:$0xf]
    %v682 = vld [vmem:[#allocation8 + $0x2c] sm:$0xf]
    %v683 = vld [vmem:[#allocation8 + $0x30] sm:$0xf]
    %v684 = vld [vmem:[#allocation8 + $0x34] sm:$0xf]
    %v685 = vld [vmem:[#allocation8 + $0x38] sm:$0xf]
    %v686 = vld [vmem:[#allocation8 + $0x3c] sm:$0xf]
    %s687 = scalar_lea.vmem %s4, 5
    %v688 = vld [vmem:[%s687] sm:$0x1]
    %v690 = vlaneseq
    %v691 = vshrl.u32 %v690, 7
    %v692 = vsub.s32 0, %v691
    %v693 = vrot.slane %v688, %v692
    %v711 = vunpack.c.l.b16 %v671
    %v712 = vunpack.c.l.b16 %v672
    %v713 = vunpack.c.l.b16 %v673
    %v714 = vunpack.c.l.b16 %v674
    %v715 = vunpack.c.l.b16 %v675
    %v716 = vunpack.c.l.b16 %v676
    %v717 = vunpack.c.l.b16 %v677
    %v718 = vunpack.c.l.b16 %v678
    %v719 = vunpack.c.l.b16 %v679
    %v720 = vunpack.c.l.b16 %v680
    %v721 = vunpack.c.l.b16 %v681
    %v722 = vunpack.c.l.b16 %v682
    %v723 = vunpack.c.l.b16 %v683
    %v724 = vunpack.c.l.b16 %v684
    %v725 = vunpack.c.l.b16 %v685
    %v726 = vunpack.c.l.b16 %v686
    %v727 = vpack.c.b16 %v712, %v711
    %v728 = vpack.c.b16 %v714, %v713
    %v729 = vpack.c.b16 %v716, %v715
    %v730 = vpack.c.b16 %v718, %v717
    %v731 = vpack.c.b16 %v720, %v719
    %v732 = vpack.c.b16 %v722, %v721
    %v733 = vpack.c.b16 %v724, %v723
    %v734 = vpack.c.b16 %v726, %v725
    %743 = vmatprep.subr.bf16.mxu0 0
    %744 = vmatpush1.bf16.msra.mxu0 %v727
    %745 = vmatprep.subr.bf16.mxu0 0
    %746 = vmatpush1.bf16.msra.mxu0 %v728
    %747 = vmatprep.subr.bf16.mxu0 0
    %748 = vmatpush1.bf16.msra.mxu0 %v729
    %749 = vmatprep.subr.bf16.mxu0 0
    %750 = vmatpush1.bf16.msra.mxu0 %v730
    %751 = vmatprep.subr.bf16.mxu0 0
    %752 = vmatpush1.bf16.msra.mxu0 %v731
    %753 = vmatprep.subr.bf16.mxu0 0
    %754 = vmatpush1.bf16.msra.mxu0 %v732
    %755 = vmatprep.subr.bf16.mxu0 0
    %756 = vmatpush1.bf16.msra.mxu0 %v733
    %757 = vmatprep.subr.bf16.mxu0 0
    %758 = vmatpush1.bf16.msra.mxu0 %v734
    %759 = vmatprep.subr.bf16.mxu0 0
    %760 = vmatpush1.bf16.msra.mxu0 0
    %761 = vmatprep.subr.bf16.mxu0 0
    %762 = vmatpush1.bf16.msra.mxu0 0
    %763 = vmatprep.subr.bf16.mxu0 0
    %764 = vmatpush1.bf16.msra.mxu0 0
    %765 = vmatprep.subr.bf16.mxu0 0
    %766 = vmatpush1.bf16.msra.mxu0 0
    %767 = vmatprep.subr.bf16.mxu0 0
    %768 = vmatpush1.bf16.msra.mxu0 0
    %769 = vmatprep.subr.bf16.mxu0 0
    %770 = vmatpush1.bf16.msra.mxu0 0
    %771 = vmatprep.subr.bf16.mxu0 0
    %772 = vmatpush1.bf16.msra.mxu0 0
    %773 = vmatprep.subr.bf16.mxu0 0
    %774 = vmatpush1.bf16.msra.mxu0 0
    %775 = vmatprep.mubr.bf16.mxu0 0
    %776 = vmatmul.mubr.bf16.gmra.mrb[0].mxu0 %v670
    %v777 = vpop.f32.mrb[0].mxu0
    %v778 = vadd.f32 %v693, %v777
    %v779 = vpop.f32.mrb[0].mxu0
    %v780 = vpop.f32.mrb[0].mxu0
    %v781 = vadd.f32 %v693, %v780
    %v782 = vpop.f32.mrb[0].mxu0
    %783 = vdwg.mxu0
    %784 = vst [vmem:[#allocation10] sm:$0xff] %v778
    %785 = vst [vmem:[#allocation10 + $0x8] sm:$0xff] %v781
    // Predicated region
    $region38: #{tpu_custom_call.1} parent=1 // pred_check
      _
    $region39: #{tpu_custom_call.1} parent=1 // pred_check_branch
      %787 = sbr.rel (0) target = $region41
    $region40: #{tpu_custom_call.1} parent=1 // pred_region
      %s789 = ssub.s32 256, 256
      %790 = vsyncadd [#allocation4], %s789
      %s791 = sshll.u32 [#allocation10], 4
      %s792 = int_to_ptr.vmem [resolvable:$true] %s791
      %797 = dma.vmem_to_hbm [thread:$0]  %s792, 256, %s5, [#allocation4], 128, 128, 8
    $region41: #{tpu_custom_call.1} parent=1 // pred_fallthru
      _
    // Predicated region
    $region42: #{tpu_custom_call.1} parent=1 // pred_check
      _
    $region43: #{tpu_custom_call.1} parent=1 // pred_check_branch
      %799 = sbr.rel (0) target = $region45
    $region44: #{tpu_custom_call.1} parent=1 // pred_region
      %800 = dma.done [#allocation4], 256
    $region45: #{tpu_custom_call.1} parent=1 // pred_fallthru
      _
    %801 = vsyncpa [#allocation3], 1
    %802 = vsyncpa [#allocation6], 1
    %803 = vsyncpa [#allocation9], 1
    %804 = vsyncpa [#allocation4], 1

// kernel: tpu_custom_call.1
$region0: #{tpu_custom_call.1}
  #allocation0 [shape = 'u32[]', space=smem, size = 0x4, offset = 0x4, fixed_abs, tag = 'smem constant byte address 0x4 - core index']
  #allocation1 [shape = 'u32[144,128]{1,0:T(1,128)}', space=vmem, size = 0x12000, scoped, tag = 'internal scratch']
  %s0 = inlined_call_operand.hbm [shape: bf16[16,128], index: 0, kind: input, shape index: {}]
  %s1 = inlined_call_operand.hbm [shape: bf16[128,128], index: 1, kind: input, shape index: {}]
  %s2 = inlined_call_operand.hbm [shape: bf16[4,128,128], index: 2, kind: input, shape index: {}]
  %s3 = inlined_call_operand.hbm [shape: bf16[128,128], index: 3, kind: input, shape index: {}]
  %s4 = inlined_call_operand.vmem [shape: f32[6,1,128], index: 4, kind: input, shape index: {}]
  %s5 = inlined_call_operand.hbm [shape: f32[16,128], index: 5, kind: output, shape index: {}]
  %s6 = sld [smem:[#allocation0]]
  $region46: #{tpu_custom_call.1} parent=0
    _
  %s8 = ssub.s32 1, %s6
  %s9 = scalar_select 0, %s8, %s6
  $region1: #{tpu_custom_call.1} parent=0
    #allocation2 [shape = 'u8[4096]{0}', space=vmem, size = 0x1000, scoped, tag = 'input window, operand 0, single buffered']
    #allocation3 [shape = 's32[1]{0}', space=sflag, size = 0x4, scoped, tag = 'scoped memory for tpu_custom_call.1']
    #allocation4 [shape = 's32[1]{0}', space=sflag, size = 0x4, scoped, tag = 'scoped memory for tpu_custom_call.1']
    #allocation5 [shape = 'u8[32768]{0}', space=vmem, size = 0x8000, scoped, tag = 'input window, operand 1, single buffered']
    #allocation6 [shape = 's32[1]{0}', space=sflag, size = 0x4, scoped, tag = 'scoped memory for tpu_custom_call.1']
    #allocation7 [shape = 'u8[131072]{0}', space=vmem, size = 0x20000, scoped, tag = 'input window, operand 2, single buffered']
    #allocation8 [shape = 'u8[32768]{0}', space=vmem, size = 0x8000, scoped, tag = 'input window, operand 3, single buffered']
    #allocation9 [shape = 's32[1]{0}', space=sflag, size = 0x4, scoped, tag = 'scoped memory for tpu_custom_call.1']
    #allocation10 [shape = 'u8[8192]{0}', space=vmem, size = 0x2000, scoped, tag = 'output window, operand 0, single buffered']
    %10 = vsyncpa [#allocation3], 0
    %11 = vsyncpa [#allocation6], 0
    %12 = vsyncpa [#allocation9], 0
    %13 = vsyncpa [#allocation4], 0
    // Predicated region
    $region2: #{tpu_custom_call.1} parent=1 // pred_check
      _
    $region3: #{tpu_custom_call.1} parent=1 // pred_check_branch
      %15 = sbr.rel (0) target = $region5
    $region4: #{tpu_custom_call.1} parent=1 // pred_region
      %s17 = ssub.s32 128, 128
      %18 = vsyncadd [#allocation3], %s17
      %s19 = sshll.u32 [#allocation2], 4
      %s20 = int_to_ptr.vmem [resolvable:$true] %s19
      %25 = dma.hbm_to_vmem [thread:$0]  %s0, 128, %s20, [#allocation3], 64, 64, 4
    $region5: #{tpu_custom_call.1} parent=1 // pred_fallthru
      _
    // Predicated region
    $region6: #{tpu_custom_call.1} parent=1 // pred_check
      _
    $region7: #{tpu_custom_call.1} parent=1 // pred_check_branch
      %27 = sbr.rel (0) target = $region9
    $region8: #{tpu_custom_call.1} parent=1 // pred_region
      %s29 = ssub.s32 1024, 1024
      %30 = vsyncadd [#allocation6], %s29
      %s31 = sshll.u32 [#allocation5], 4
      %s32 = int_to_ptr.vmem [resolvable:$true] %s31
      %37 = dma.hbm_to_vmem [thread:$0]  %s1, 1024, %s32, [#allocation6], 64, 64, 4
    $region9: #{tpu_custom_call.1} parent=1 // pred_fallthru
      _
    // Predicated region
    $region10: #{tpu_custom_call.1} parent=1 // pred_check
      _
    $region11: #{tpu_custom_call.1} parent=1 // pred_check_branch
      %39 = sbr.rel (0) target = $region13
    $region12: #{tpu_custom_call.1} parent=1 // pred_region
      %s41 = ssub.s32 4096, 4096
      %42 = vsyncadd [#allocation6], %s41
      %s43 = sshll.u32 [#allocation7], 4
      %s44 = int_to_ptr.vmem [resolvable:$true] %s43
      %49 = dma.hbm_to_vmem [thread:$0]  %s2, 4096, %s44, [#allocation6], 64, 64, 4
    $region13: #{tpu_custom_call.1} parent=1 // pred_fallthru
      _
    // Predicated region
    $region14: #{tpu_custom_call.1} parent=1 // pred_check
      _
    $region15: #{tpu_custom_call.1} parent=1 // pred_check_branch
      %51 = sbr.rel (0) target = $region17
    $region16: #{tpu_custom_call.1} parent=1 // pred_region
      %s53 = ssub.s32 1024, 1024
      %54 = vsyncadd [#allocation9], %s53
      %s55 = sshll.u32 [#allocation8], 4
      %s56 = int_to_ptr.vmem [resolvable:$true] %s55
      %61 = dma.hbm_to_vmem [thread:$0]  %s3, 1024, %s56, [#allocation9], 64, 64, 4
    $region17: #{tpu_custom_call.1} parent=1 // pred_fallthru
      _
    // Predicated region
    $region18: #{tpu_custom_call.1} parent=1 // pred_check
      _
    $region19: #{tpu_custom_call.1} parent=1 // pred_check_branch
      %63 = sbr.rel (0) target = $region21
    $region20: #{tpu_custom_call.1} parent=1 // pred_region
      _
    $region21: #{tpu_custom_call.1} parent=1 // pred_fallthru
      _
    // Predicated region
    $region22: #{tpu_custom_call.1} parent=1 // pred_check
      _
    $region23: #{tpu_custom_call.1} parent=1 // pred_check_branch
      %65 = sbr.rel (0) target = $region25
    $region24: #{tpu_custom_call.1} parent=1 // pred_region
      %66 = dma.done [#allocation3], 128
    $region25: #{tpu_custom_call.1} parent=1 // pred_fallthru
      _
    // Predicated region
    $region26: #{tpu_custom_call.1} parent=1 // pred_check
      _
    $region27: #{tpu_custom_call.1} parent=1 // pred_check_branch
      %68 = sbr.rel (0) target = $region29
    $region28: #{tpu_custom_call.1} parent=1 // pred_region
      %69 = dma.done [#allocation6], 1024
    $region29: #{tpu_custom_call.1} parent=1 // pred_fallthru
      _
    // Predicated region
    $region30: #{tpu_custom_call.1} parent=1 // pred_check
      _
    $region31: #{tpu_custom_call.1} parent=1 // pred_check_branch
      %71 = sbr.rel (0) target = $region33
    $region32: #{tpu_custom_call.1} parent=1 // pred_region
      %72 = dma.done [#allocation6], 4096
    $region33: #{tpu_custom_call.1} parent=1 // pred_fallthru
      _
    // Predicated region
    $region34: #{tpu_custom_call.1} parent=1 // pred_check
      _
    $region35: #{tpu_custom_call.1} parent=1 // pred_check_branch
      %74 = sbr.rel (0) target = $region37
    $region36: #{tpu_custom_call.1} parent=1 // pred_region
      %75 = dma.done [#allocation9], 1024
    $region37: #{tpu_custom_call.1} parent=1 // pred_fallthru
      _
    %v77 = vld [vmem:[#allocation2] sm:$0xf]
    %v78 = vld [vmem:[#allocation2 + $0x4] sm:$0xf]
    %v79 = vld [vmem:[#allocation5] sm:$0xf]
    %v80 = vld [vmem:[#allocation5 + $0x4] sm:$0xf]
    %v81 = vld [vmem:[#allocation5 + $0x8] sm:$0xf]
    %v82 = vld [vmem:[#allocation5 + $0xc] sm:$0xf]
    %v83 = vld [vmem:[#allocation5 + $0x10] sm:$0xf]
    %v84 = vld [vmem:[#allocation5 + $0x14] sm:$0xf]
    %v85 = vld [vmem:[#allocation5 + $0x18] sm:$0xf]
    %v86 = vld [vmem:[#allocation5 + $0x1c] sm:$0xf]
    %v87 = vld [vmem:[#allocation5 + $0x20] sm:$0xf]
    %v88 = vld [vmem:[#allocation5 + $0x24] sm:$0xf]
    %v89 = vld [vmem:[#allocation5 + $0x28] sm:$0xf]
    %v90 = vld [vmem:[#allocation5 + $0x2c] sm:$0xf]
    %v91 = vld [vmem:[#allocation5 + $0x30] sm:$0xf]
    %v92 = vld [vmem:[#allocation5 + $0x34] sm:$0xf]
    %v93 = vld [vmem:[#allocation5 + $0x38] sm:$0xf]
    %v94 = vld [vmem:[#allocation5 + $0x3c] sm:$0xf]
    %v95 = vld [vmem:[%s4] sm:$0x1]
    %v97 = vlaneseq
    %v98 = vshrl.u32 %v97, 7
    %v99 = vsub.s32 0, %v98
    %v100 = vrot.slane %v95, %v99
    %v104 = vunpack.c.l.b16 %v77
    %v105 = vunpack.c.l.b16 %v78
    %v106 = vpack.c.b16 %v105, %v104
    %v124 = vunpack.c.l.b16 %v79
    %v125 = vunpack.c.l.b16 %v80
    %v126 = vunpack.c.l.b16 %v81
    %v127 = vunpack.c.l.b16 %v82
    %v128 = vunpack.c.l.b16 %v83
    %v129 = vunpack.c.l.b16 %v84
    %v130 = vunpack.c.l.b16 %v85
    %v131 = vunpack.c.l.b16 %v86
    %v132 = vunpack.c.l.b16 %v87
    %v133 = vunpack.c.l.b16 %v88
    %v134 = vunpack.c.l.b16 %v89
    %v135 = vunpack.c.l.b16 %v90
    %v136 = vunpack.c.l.b16 %v91
    %v137 = vunpack.c.l.b16 %v92
    %v138 = vunpack.c.l.b16 %v93
    %v139 = vunpack.c.l.b16 %v94
    %v140 = vpack.c.b16 %v125, %v124
    %v141 = vpack.c.b16 %v127, %v126
    %v142 = vpack.c.b16 %v129, %v128
    %v143 = vpack.c.b16 %v131, %v130
    %v144 = vpack.c.b16 %v133, %v132
    %v145 = vpack.c.b16 %v135, %v134
    %v146 = vpack.c.b16 %v137, %v136
    %v147 = vpack.c.b16 %v139, %v138
    %156 = vmatprep.subr.bf16.mxu0 0
    %157 = vmatpush1.bf16.msra.mxu0 %v140
    %158 = vmatprep.subr.bf16.mxu0 0
    %159 = vmatpush1.bf16.msra.mxu0 %v141
    %160 = vmatprep.subr.bf16.mxu0 0
    %161 = vmatpush1.bf16.msra.mxu0 %v142
    %162 = vmatprep.subr.bf16.mxu0 0
    %163 = vmatpush1.bf16.msra.mxu0 %v143
    %164 = vmatprep.subr.bf16.mxu0 0
    %165 = vmatpush1.bf16.msra.mxu0 %v144
    %166 = vmatprep.subr.bf16.mxu0 0
    %167 = vmatpush1.bf16.msra.mxu0 %v145
    %168 = vmatprep.subr.bf16.mxu0 0
    %169 = vmatpush1.bf16.msra.mxu0 %v146
    %170 = vmatprep.subr.bf16.mxu0 0
    %171 = vmatpush1.bf16.msra.mxu0 %v147
    %172 = vmatprep.subr.bf16.mxu0 0
    %173 = vmatpush1.bf16.msra.mxu0 0
    %174 = vmatprep.subr.bf16.mxu0 0
    %175 = vmatpush1.bf16.msra.mxu0 0
    %176 = vmatprep.subr.bf16.mxu0 0
    %177 = vmatpush1.bf16.msra.mxu0 0
    %178 = vmatprep.subr.bf16.mxu0 0
    %179 = vmatpush1.bf16.msra.mxu0 0
    %180 = vmatprep.subr.bf16.mxu0 0
    %181 = vmatpush1.bf16.msra.mxu0 0
    %182 = vmatprep.subr.bf16.mxu0 0
    %183 = vmatpush1.bf16.msra.mxu0 0
    %184 = vmatprep.subr.bf16.mxu0 0
    %185 = vmatpush1.bf16.msra.mxu0 0
    %186 = vmatprep.subr.bf16.mxu0 0
    %187 = vmatpush1.bf16.msra.mxu0 0
    %188 = vmatprep.mubr.bf16.mxu0 0
    %189 = vmatmul.mubr.bf16.gmra.mrb[0].mxu0 %v106
    %v190 = vpop.f32.mrb[0].mxu0
    %v191 = vadd.f32 %v100, %v190
    %v192 = vpop.f32.mrb[0].mxu0
    %v193 = vpop.f32.mrb[0].mxu0
    %v194 = vadd.f32 %v100, %v193
    %v195 = vpop.f32.mrb[0].mxu0
    %196 = vdwg.mxu0
    %v197 = vmax.f32 %v191, 0.0
    %v198 = vmax.f32 %v194, 0.0
    %v199 = vpack.c.bf16 %v198, %v197
    %v200 = vld [vmem:[#allocation7] sm:$0xf]
    %v201 = vld [vmem:[#allocation7 + $0x4] sm:$0xf]
    %v202 = vld [vmem:[#allocation7 + $0x8] sm:$0xf]
    %v203 = vld [vmem:[#allocation7 + $0xc] sm:$0xf]
    %v204 = vld [vmem:[#allocation7 + $0x10] sm:$0xf]
    %v205 = vld [vmem:[#allocation7 + $0x14] sm:$0xf]
    %v206 = vld [vmem:[#allocation7 + $0x18] sm:$0xf]
    %v207 = vld [vmem:[#allocation7 + $0x1c] sm:$0xf]
    %v208 = vld [vmem:[#allocation7 + $0x20] sm:$0xf]
    %v209 = vld [vmem:[#allocation7 + $0x24] sm:$0xf]
    %v210 = vld [vmem:[#allocation7 + $0x28] sm:$0xf]
    %v211 = vld [vmem:[#allocation7 + $0x2c] sm:$0xf]
    %v212 = vld [vmem:[#allocation7 + $0x30] sm:$0xf]
    %v213 = vld [vmem:[#allocation7 + $0x34] sm:$0xf]
    %v214 = vld [vmem:[#allocation7 + $0x38] sm:$0xf]
    %v215 = vld [vmem:[#allocation7 + $0x3c] sm:$0xf]
    %s216 = scalar_lea.vmem %s4, 1
    %v217 = vld [vmem:[%s216] sm:$0x1]
    %v219 = vlaneseq
    %v220 = vshrl.u32 %v219, 7
    %v221 = vsub.s32 0, %v220
    %v222 = vrot.slane %v217, %v221
    %v240 = vunpack.c.l.b16 %v200
    %v241 = vunpack.c.l.b16 %v201
    %v242 = vunpack.c.l.b16 %v202
    %v243 = vunpack.c.l.b16 %v203
    %v244 = vunpack.c.l.b16 %v204
    %v245 = vunpack.c.l.b16 %v205
    %v246 = vunpack.c.l.b16 %v206
    %v247 = vunpack.c.l.b16 %v207
    %v248 = vunpack.c.l.b16 %v208
    %v249 = vunpack.c.l.b16 %v209
    %v250 = vunpack.c.l.b16 %v210
    %v251 = vunpack.c.l.b16 %v211
    %v252 = vunpack.c.l.b16 %v212
    %v253 = vunpack.c.l.b16 %v213
    %v254 = vunpack.c.l.b16 %v214
    %v255 = vunpack.c.l.b16 %v215
    %v256 = vpack.c.b16 %v241, %v240
    %v257 = vpack.c.b16 %v243, %v242
    %v258 = vpack.c.b16 %v245, %v244
    %v259 = vpack.c.b16 %v247, %v246
    %v260 = vpack.c.b16 %v249, %v248
    %v261 = vpack.c.b16 %v251, %v250
    %v262 = vpack.c.b16 %v253, %v252
    %v263 = vpack.c.b16 %v255, %v254
    %272 = vmatprep.subr.bf16.mxu0 0
    %273 = vmatpush1.bf16.msra.mxu0 %v256
    %274 = vmatprep.subr.bf16.mxu0 0
    %275 = vmatpush1.bf16.msra.mxu0 %v257
    %276 = vmatprep.subr.bf16.mxu0 0
    %277 = vmatpush1.bf16.msra.mxu0 %v258
    %278 = vmatprep.subr.bf16.mxu0 0
    %279 = vmatpush1.bf16.msra.mxu0 %v259
    %280 = vmatprep.subr.bf16.mxu0 0
    %281 = vmatpush1.bf16.msra.mxu0 %v260
    %282 = vmatprep.subr.bf16.mxu0 0
    %283 = vmatpush1.bf16.msra.mxu0 %v261
    %284 = vmatprep.subr.bf16.mxu0 0
    %285 = vmatpush1.bf16.msra.mxu0 %v262
    %286 = vmatprep.subr.bf16.mxu0 0
    %287 = vmatpush1.bf16.msra.mxu0 %v263
    %288 = vmatprep.subr.bf16.mxu0 0
    %289 = vmatpush1.bf16.msra.mxu0 0
    %290 = vmatprep.subr.bf16.mxu0 0
    %291 = vmatpush1.bf16.msra.mxu0 0
    %292 = vmatprep.subr.bf16.mxu0 0
    %293 = vmatpush1.bf16.msra.mxu0 0
    %294 = vmatprep.subr.bf16.mxu0 0
    %295 = vmatpush1.bf16.msra.mxu0 0
    %296 = vmatprep.subr.bf16.mxu0 0
    %297 = vmatpush1.bf16.msra.mxu0 0
    %298 = vmatprep.subr.bf16.mxu0 0
    %299 = vmatpush1.bf16.msra.mxu0 0
    %300 = vmatprep.subr.bf16.mxu0 0
    %301 = vmatpush1.bf16.msra.mxu0 0
    %302 = vmatprep.subr.bf16.mxu0 0
    %303 = vmatpush1.bf16.msra.mxu0 0
    %304 = vmatprep.mubr.bf16.mxu0 0
    %305 = vmatmul.mubr.bf16.gmra.mrb[0].mxu0 %v199
    %v306 = vpop.f32.mrb[0].mxu0
    %v307 = vadd.f32 %v222, %v306
    %v308 = vpop.f32.mrb[0].mxu0
    %v309 = vpop.f32.mrb[0].mxu0
    %v310 = vadd.f32 %v222, %v309
    %v311 = vpop.f32.mrb[0].mxu0
    %312 = vdwg.mxu0
    %v313 = vmax.f32 %v307, 0.0
    %v314 = vmax.f32 %v310, 0.0
    %v315 = vpack.c.bf16 %v314, %v313
    %s316 = scalar_lea.vmem [#allocation7], 64
    %v317 = vld [vmem:[%s316] sm:$0xf]
    %v318 = vld [vmem:[%s316 + $0x4] sm:$0xf]
    %v319 = vld [vmem:[%s316 + $0x8] sm:$0xf]
    %v320 = vld [vmem:[%s316 + $0xc] sm:$0xf]
    %v321 = vld [vmem:[%s316 + $0x10] sm:$0xf]
    %v322 = vld [vmem:[%s316 + $0x14] sm:$0xf]
    %v323 = vld [vmem:[%s316 + $0x18] sm:$0xf]
    %v324 = vld [vmem:[%s316 + $0x1c] sm:$0xf]
    %v325 = vld [vmem:[%s316 + $0x20] sm:$0xf]
    %v326 = vld [vmem:[%s316 + $0x24] sm:$0xf]
    %v327 = vld [vmem:[%s316 + $0x28] sm:$0xf]
    %v328 = vld [vmem:[%s316 + $0x2c] sm:$0xf]
    %v329 = vld [vmem:[%s316 + $0x30] sm:$0xf]
    %v330 = vld [vmem:[%s316 + $0x34] sm:$0xf]
    %v331 = vld [vmem:[%s316 + $0x38] sm:$0xf]
    %v332 = vld [vmem:[%s316 + $0x3c] sm:$0xf]
    %s333 = scalar_lea.vmem %s4, 2
    %v334 = vld [vmem:[%s333] sm:$0x1]
    %v336 = vlaneseq
    %v337 = vshrl.u32 %v336, 7
    %v338 = vsub.s32 0, %v337
    %v339 = vrot.slane %v334, %v338
    %v357 = vunpack.c.l.b16 %v317
    %v358 = vunpack.c.l.b16 %v318
    %v359 = vunpack.c.l.b16 %v319
    %v360 = vunpack.c.l.b16 %v320
    %v361 = vunpack.c.l.b16 %v321
    %v362 = vunpack.c.l.b16 %v322
    %v363 = vunpack.c.l.b16 %v323
    %v364 = vunpack.c.l.b16 %v324
    %v365 = vunpack.c.l.b16 %v325
    %v366 = vunpack.c.l.b16 %v326
    %v367 = vunpack.c.l.b16 %v327
    %v368 = vunpack.c.l.b16 %v328
    %v369 = vunpack.c.l.b16 %v329
    %v370 = vunpack.c.l.b16 %v330
    %v371 = vunpack.c.l.b16 %v331
    %v372 = vunpack.c.l.b16 %v332
    %v373 = vpack.c.b16 %v358, %v357
    %v374 = vpack.c.b16 %v360, %v359
    %v375 = vpack.c.b16 %v362, %v361
    %v376 = vpack.c.b16 %v364, %v363
    %v377 = vpack.c.b16 %v366, %v365
    %v378 = vpack.c.b16 %v368, %v367
    %v379 = vpack.c.b16 %v370, %v369
    %v380 = vpack.c.b16 %v372, %v371
    %389 = vmatprep.subr.bf16.mxu0 0
    %390 = vmatpush1.bf16.msra.mxu0 %v373
    %391 = vmatprep.subr.bf16.mxu0 0
    %392 = vmatpush1.bf16.msra.mxu0 %v374
    %393 = vmatprep.subr.bf16.mxu0 0
    %394 = vmatpush1.bf16.msra.mxu0 %v375
    %395 = vmatprep.subr.bf16.mxu0 0
    %396 = vmatpush1.bf16.msra.mxu0 %v376
    %397 = vmatprep.subr.bf16.mxu0 0
    %398 = vmatpush1.bf16.msra.mxu0 %v377
    %399 = vmatprep.subr.bf16.mxu0 0
    %400 = vmatpush1.bf16.msra.mxu0 %v378
    %401 = vmatprep.subr.bf16.mxu0 0
    %402 = vmatpush1.bf16.msra.mxu0 %v379
    %403 = vmatprep.subr.bf16.mxu0 0
    %404 = vmatpush1.bf16.msra.mxu0 %v380
    %405 = vmatprep.subr.bf16.mxu0 0
    %406 = vmatpush1.bf16.msra.mxu0 0
    %407 = vmatprep.subr.bf16.mxu0 0
    %408 = vmatpush1.bf16.msra.mxu0 0
    %409 = vmatprep.subr.bf16.mxu0 0
    %410 = vmatpush1.bf16.msra.mxu0 0
    %411 = vmatprep.subr.bf16.mxu0 0
    %412 = vmatpush1.bf16.msra.mxu0 0
    %413 = vmatprep.subr.bf16.mxu0 0
    %414 = vmatpush1.bf16.msra.mxu0 0
    %415 = vmatprep.subr.bf16.mxu0 0
    %416 = vmatpush1.bf16.msra.mxu0 0
    %417 = vmatprep.subr.bf16.mxu0 0
    %418 = vmatpush1.bf16.msra.mxu0 0
    %419 = vmatprep.subr.bf16.mxu0 0
    %420 = vmatpush1.bf16.msra.mxu0 0
    %421 = vmatprep.mubr.bf16.mxu0 0
    %422 = vmatmul.mubr.bf16.gmra.mrb[0].mxu0 %v315
    %v423 = vpop.f32.mrb[0].mxu0
    %v424 = vadd.f32 %v339, %v423
    %v425 = vpop.f32.mrb[0].mxu0
    %v426 = vpop.f32.mrb[0].mxu0
    %v427 = vadd.f32 %v339, %v426
    %v428 = vpop.f32.mrb[0].mxu0
    %429 = vdwg.mxu0
    %v430 = vmax.f32 %v424, 0.0
    %v431 = vmax.f32 %v427, 0.0
    %v432 = vadd.f32 %v430, %v197
    %v433 = vadd.f32 %v431, %v198
    %v434 = vpack.c.bf16 %v433, %v432
    %s435 = scalar_lea.vmem [#allocation7], 128
    %v436 = vld [vmem:[%s435] sm:$0xf]
    %v437 = vld [vmem:[%s435 + $0x4] sm:$0xf]
    %v438 = vld [vmem:[%s435 + $0x8] sm:$0xf]
    %v439 = vld [vmem:[%s435 + $0xc] sm:$0xf]
    %v440 = vld [vmem:[%s435 + $0x10] sm:$0xf]
    %v441 = vld [vmem:[%s435 + $0x14] sm:$0xf]
    %v442 = vld [vmem:[%s435 + $0x18] sm:$0xf]
    %v443 = vld [vmem:[%s435 + $0x1c] sm:$0xf]
    %v444 = vld [vmem:[%s435 + $0x20] sm:$0xf]
    %v445 = vld [vmem:[%s435 + $0x24] sm:$0xf]
    %v446 = vld [vmem:[%s435 + $0x28] sm:$0xf]
    %v447 = vld [vmem:[%s435 + $0x2c] sm:$0xf]
    %v448 = vld [vmem:[%s435 + $0x30] sm:$0xf]
    %v449 = vld [vmem:[%s435 + $0x34] sm:$0xf]
    %v450 = vld [vmem:[%s435 + $0x38] sm:$0xf]
    %v451 = vld [vmem:[%s435 + $0x3c] sm:$0xf]
    %s452 = scalar_lea.vmem %s4, 3
    %v453 = vld [vmem:[%s452] sm:$0x1]
    %v455 = vlaneseq
    %v456 = vshrl.u32 %v455, 7
    %v457 = vsub.s32 0, %v456
    %v458 = vrot.slane %v453, %v457
    %v476 = vunpack.c.l.b16 %v436
    %v477 = vunpack.c.l.b16 %v437
    %v478 = vunpack.c.l.b16 %v438
    %v479 = vunpack.c.l.b16 %v439
    %v480 = vunpack.c.l.b16 %v440
    %v481 = vunpack.c.l.b16 %v441
    %v482 = vunpack.c.l.b16 %v442
    %v483 = vunpack.c.l.b16 %v443
    %v484 = vunpack.c.l.b16 %v444
    %v485 = vunpack.c.l.b16 %v445
    %v486 = vunpack.c.l.b16 %v446
    %v487 = vunpack.c.l.b16 %v447
    %v488 = vunpack.c.l.b16 %v448
    %v489 = vunpack.c.l.b16 %v449
    %v490 = vunpack.c.l.b16 %v450
    %v491 = vunpack.c.l.b16 %v451
    %v492 = vpack.c.b16 %v477, %v476
    %v493 = vpack.c.b16 %v479, %v478
    %v494 = vpack.c.b16 %v481, %v480
    %v495 = vpack.c.b16 %v483, %v482
    %v496 = vpack.c.b16 %v485, %v484
    %v497 = vpack.c.b16 %v487, %v486
    %v498 = vpack.c.b16 %v489, %v488
    %v499 = vpack.c.b16 %v491, %v490
    %508 = vmatprep.subr.bf16.mxu0 0
    %509 = vmatpush1.bf16.msra.mxu0 %v492
    %510 = vmatprep.subr.bf16.mxu0 0
    %511 = vmatpush1.bf16.msra.mxu0 %v493
    %512 = vmatprep.subr.bf16.mxu0 0
    %513 = vmatpush1.bf16.msra.mxu0 %v494
    %514 = vmatprep.subr.bf16.mxu0 0
    %515 = vmatpush1.bf16.msra.mxu0 %v495
    %516 = vmatprep.subr.bf16.mxu0 0
    %517 = vmatpush1.bf16.msra.mxu0 %v496
    %518 = vmatprep.subr.bf16.mxu0 0
    %519 = vmatpush1.bf16.msra.mxu0 %v497
    %520 = vmatprep.subr.bf16.mxu0 0
    %521 = vmatpush1.bf16.msra.mxu0 %v498
    %522 = vmatprep.subr.bf16.mxu0 0
    %523 = vmatpush1.bf16.msra.mxu0 %v499
    %524 = vmatprep.subr.bf16.mxu0 0
    %525 = vmatpush1.bf16.msra.mxu0 0
    %526 = vmatprep.subr.bf16.mxu0 0
    %527 = vmatpush1.bf16.msra.mxu0 0
    %528 = vmatprep.subr.bf16.mxu0 0
    %529 = vmatpush1.bf16.msra.mxu0 0
    %530 = vmatprep.subr.bf16.mxu0 0
    %531 = vmatpush1.bf16.msra.mxu0 0
    %532 = vmatprep.subr.bf16.mxu0 0
    %533 = vmatpush1.bf16.msra.mxu0 0
    %534 = vmatprep.subr.bf16.mxu0 0
    %535 = vmatpush1.bf16.msra.mxu0 0
    %536 = vmatprep.subr.bf16.mxu0 0
    %537 = vmatpush1.bf16.msra.mxu0 0
    %538 = vmatprep.subr.bf16.mxu0 0
    %539 = vmatpush1.bf16.msra.mxu0 0
    %540 = vmatprep.mubr.bf16.mxu0 0
    %541 = vmatmul.mubr.bf16.gmra.mrb[0].mxu0 %v434
    %v542 = vpop.f32.mrb[0].mxu0
    %v543 = vadd.f32 %v458, %v542
    %v544 = vpop.f32.mrb[0].mxu0
    %v545 = vpop.f32.mrb[0].mxu0
    %v546 = vadd.f32 %v458, %v545
    %v547 = vpop.f32.mrb[0].mxu0
    %548 = vdwg.mxu0
    %v549 = vmax.f32 %v543, 0.0
    %v550 = vmax.f32 %v546, 0.0
    %v551 = vpack.c.bf16 %v550, %v549
    %s552 = scalar_lea.vmem [#allocation7], 192
    %v553 = vld [vmem:[%s552] sm:$0xf]
    %v554 = vld [vmem:[%s552 + $0x4] sm:$0xf]
    %v555 = vld [vmem:[%s552 + $0x8] sm:$0xf]
    %v556 = vld [vmem:[%s552 + $0xc] sm:$0xf]
    %v557 = vld [vmem:[%s552 + $0x10] sm:$0xf]
    %v558 = vld [vmem:[%s552 + $0x14] sm:$0xf]
    %v559 = vld [vmem:[%s552 + $0x18] sm:$0xf]
    %v560 = vld [vmem:[%s552 + $0x1c] sm:$0xf]
    %v561 = vld [vmem:[%s552 + $0x20] sm:$0xf]
    %v562 = vld [vmem:[%s552 + $0x24] sm:$0xf]
    %v563 = vld [vmem:[%s552 + $0x28] sm:$0xf]
    %v564 = vld [vmem:[%s552 + $0x2c] sm:$0xf]
    %v565 = vld [vmem:[%s552 + $0x30] sm:$0xf]
    %v566 = vld [vmem:[%s552 + $0x34] sm:$0xf]
    %v567 = vld [vmem:[%s552 + $0x38] sm:$0xf]
    %v568 = vld [vmem:[%s552 + $0x3c] sm:$0xf]
    %s569 = scalar_lea.vmem %s4, 4
    %v570 = vld [vmem:[%s569] sm:$0x1]
    %v572 = vlaneseq
    %v573 = vshrl.u32 %v572, 7
    %v574 = vsub.s32 0, %v573
    %v575 = vrot.slane %v570, %v574
    %v593 = vunpack.c.l.b16 %v553
    %v594 = vunpack.c.l.b16 %v554
    %v595 = vunpack.c.l.b16 %v555
    %v596 = vunpack.c.l.b16 %v556
    %v597 = vunpack.c.l.b16 %v557
    %v598 = vunpack.c.l.b16 %v558
    %v599 = vunpack.c.l.b16 %v559
    %v600 = vunpack.c.l.b16 %v560
    %v601 = vunpack.c.l.b16 %v561
    %v602 = vunpack.c.l.b16 %v562
    %v603 = vunpack.c.l.b16 %v563
    %v604 = vunpack.c.l.b16 %v564
    %v605 = vunpack.c.l.b16 %v565
    %v606 = vunpack.c.l.b16 %v566
    %v607 = vunpack.c.l.b16 %v567
    %v608 = vunpack.c.l.b16 %v568
    %v609 = vpack.c.b16 %v594, %v593
    %v610 = vpack.c.b16 %v596, %v595
    %v611 = vpack.c.b16 %v598, %v597
    %v612 = vpack.c.b16 %v600, %v599
    %v613 = vpack.c.b16 %v602, %v601
    %v614 = vpack.c.b16 %v604, %v603
    %v615 = vpack.c.b16 %v606, %v605
    %v616 = vpack.c.b16 %v608, %v607
    %625 = vmatprep.subr.bf16.mxu0 0
    %626 = vmatpush1.bf16.msra.mxu0 %v609
    %627 = vmatprep.subr.bf16.mxu0 0
    %628 = vmatpush1.bf16.msra.mxu0 %v610
    %629 = vmatprep.subr.bf16.mxu0 0
    %630 = vmatpush1.bf16.msra.mxu0 %v611
    %631 = vmatprep.subr.bf16.mxu0 0
    %632 = vmatpush1.bf16.msra.mxu0 %v612
    %633 = vmatprep.subr.bf16.mxu0 0
    %634 = vmatpush1.bf16.msra.mxu0 %v613
    %635 = vmatprep.subr.bf16.mxu0 0
    %636 = vmatpush1.bf16.msra.mxu0 %v614
    %637 = vmatprep.subr.bf16.mxu0 0
    %638 = vmatpush1.bf16.msra.mxu0 %v615
    %639 = vmatprep.subr.bf16.mxu0 0
    %640 = vmatpush1.bf16.msra.mxu0 %v616
    %641 = vmatprep.subr.bf16.mxu0 0
    %642 = vmatpush1.bf16.msra.mxu0 0
    %643 = vmatprep.subr.bf16.mxu0 0
    %644 = vmatpush1.bf16.msra.mxu0 0
    %645 = vmatprep.subr.bf16.mxu0 0
    %646 = vmatpush1.bf16.msra.mxu0 0
    %647 = vmatprep.subr.bf16.mxu0 0
    %648 = vmatpush1.bf16.msra.mxu0 0
    %649 = vmatprep.subr.bf16.mxu0 0
    %650 = vmatpush1.bf16.msra.mxu0 0
    %651 = vmatprep.subr.bf16.mxu0 0
    %652 = vmatpush1.bf16.msra.mxu0 0
    %653 = vmatprep.subr.bf16.mxu0 0
    %654 = vmatpush1.bf16.msra.mxu0 0
    %655 = vmatprep.subr.bf16.mxu0 0
    %656 = vmatpush1.bf16.msra.mxu0 0
    %657 = vmatprep.mubr.bf16.mxu0 0
    %658 = vmatmul.mubr.bf16.gmra.mrb[0].mxu0 %v551
    %v659 = vpop.f32.mrb[0].mxu0
    %v660 = vadd.f32 %v575, %v659
    %v661 = vpop.f32.mrb[0].mxu0
    %v662 = vpop.f32.mrb[0].mxu0
    %v663 = vadd.f32 %v575, %v662
    %v664 = vpop.f32.mrb[0].mxu0
    %665 = vdwg.mxu0
    %v666 = vmax.f32 %v660, 0.0
    %v667 = vmax.f32 %v663, 0.0
    %v668 = vadd.f32 %v666, %v432
    %v669 = vadd.f32 %v667, %v433
    %v670 = vpack.c.bf16 %v669, %v668
    %v671 = vld [vmem:[#allocation8] sm:$0xf]
    %v672 = vld [vmem:[#allocation8 + $0x4] sm:$0xf]
    %v673 = vld [vmem:[#allocation8 + $0x8] sm:$0xf]
    %v674 = vld [vmem:[#allocation8 + $0xc] sm:$0xf]
    %v675 = vld [vmem:[#allocation8 + $0x10] sm:$0xf]
    %v676 = vld [vmem:[#allocation8 + $0x14] sm:$0xf]
    %v677 = vld [vmem:[#allocation8 + $0x18] sm:$0xf]
    %v678 = vld [vmem:[#allocation8 + $0x1c] sm:$0xf]
    %v679 = vld [vmem:[#allocation8 + $0x20] sm:$0xf]
    %v680 = vld [vmem:[#allocation8 + $0x24] sm:$0xf]
    %v681 = vld [vmem:[#allocation8 + $0x28] sm:$0xf]
    %v682 = vld [vmem:[#allocation8 + $0x2c] sm:$0xf]
    %v683 = vld [vmem:[#allocation8 + $0x30] sm:$0xf]
    %v684 = vld [vmem:[#allocation8 + $0x34] sm:$0xf]
    %v685 = vld [vmem:[#allocation8 + $0x38] sm:$0xf]
    %v686 = vld [vmem:[#allocation8 + $0x3c] sm:$0xf]
    %s687 = scalar_lea.vmem %s4, 5
    %v688 = vld [vmem:[%s687] sm:$0x1]
    %v690 = vlaneseq
    %v691 = vshrl.u32 %v690, 7
    %v692 = vsub.s32 0, %v691
    %v693 = vrot.slane %v688, %v692
    %v711 = vunpack.c.l.b16 %v671
    %v712 = vunpack.c.l.b16 %v672
    %v713 = vunpack.c.l.b16 %v673
    %v714 = vunpack.c.l.b16 %v674
    %v715 = vunpack.c.l.b16 %v675
    %v716 = vunpack.c.l.b16 %v676
    %v717 = vunpack.c.l.b16 %v677
    %v718 = vunpack.c.l.b16 %v678
    %v719 = vunpack.c.l.b16 %v679
    %v720 = vunpack.c.l.b16 %v680
    %v721 = vunpack.c.l.b16 %v681
    %v722 = vunpack.c.l.b16 %v682
    %v723 = vunpack.c.l.b16 %v683
    %v724 = vunpack.c.l.b16 %v684
    %v725 = vunpack.c.l.b16 %v685
    %v726 = vunpack.c.l.b16 %v686
    %v727 = vpack.c.b16 %v712, %v711
    %v728 = vpack.c.b16 %v714, %v713
    %v729 = vpack.c.b16 %v716, %v715
    %v730 = vpack.c.b16 %v718, %v717
    %v731 = vpack.c.b16 %v720, %v719
    %v732 = vpack.c.b16 %v722, %v721
    %v733 = vpack.c.b16 %v724, %v723
    %v734 = vpack.c.b16 %v726, %v725
    %743 = vmatprep.subr.bf16.mxu0 0
    %744 = vmatpush1.bf16.msra.mxu0 %v727
    %745 = vmatprep.subr.bf16.mxu0 0
    %746 = vmatpush1.bf16.msra.mxu0 %v728
    %747 = vmatprep.subr.bf16.mxu0 0
    %748 = vmatpush1.bf16.msra.mxu0 %v729
    %749 = vmatprep.subr.bf16.mxu0 0
    %750 = vmatpush1.bf16.msra.mxu0 %v730
    %751 = vmatprep.subr.bf16.mxu0 0
    %752 = vmatpush1.bf16.msra.mxu0 %v731
    %753 = vmatprep.subr.bf16.mxu0 0
    %754 = vmatpush1.bf16.msra.mxu0 %v732
    %755 = vmatprep.subr.bf16.mxu0 0
    %756 = vmatpush1.bf16.msra.mxu0 %v733
    %757 = vmatprep.subr.bf16.mxu0 0
    %758 = vmatpush1.bf16.msra.mxu0 %v734
    %759 = vmatprep.subr.bf16.mxu0 0
    %760 = vmatpush1.bf16.msra.mxu0 0
    %761 = vmatprep.subr.bf16.mxu0 0
    %762 = vmatpush1.bf16.msra.mxu0 0
    %763 = vmatprep.subr.bf16.mxu0 0
    %764 = vmatpush1.bf16.msra.mxu0 0
    %765 = vmatprep.subr.bf16.mxu0 0
    %766 = vmatpush1.bf16.msra.mxu0 0
    %767 = vmatprep.subr.bf16.mxu0 0
    %768 = vmatpush1.bf16.msra.mxu0 0
    %769 = vmatprep.subr.bf16.mxu0 0
    %770 = vmatpush1.bf16.msra.mxu0 0
    %771 = vmatprep.subr.bf16.mxu0 0
    %772 = vmatpush1.bf16.msra.mxu0 0
    %773 = vmatprep.subr.bf16.mxu0 0
    %774 = vmatpush1.bf16.msra.mxu0 0
    %775 = vmatprep.mubr.bf16.mxu0 0
    %776 = vmatmul.mubr.bf16.gmra.mrb[0].mxu0 %v670
    %v777 = vpop.f32.mrb[0].mxu0
    %v778 = vadd.f32 %v693, %v777
    %v779 = vpop.f32.mrb[0].mxu0
    %v780 = vpop.f32.mrb[0].mxu0
    %v781 = vadd.f32 %v693, %v780
    %v782 = vpop.f32.mrb[0].mxu0
    %783 = vdwg.mxu0
    %784 = vst [vmem:[#allocation10] sm:$0xff] %v778
    %785 = vst [vmem:[#allocation10 + $0x8] sm:$0xff] %v781
    // Predicated region
    $region38: #{tpu_custom_call.1} parent=1 // pred_check
      _
    $region39: #{tpu_custom_call.1} parent=1 // pred_check_branch
      %787 = sbr.rel (0) target = $region41
    $region40: #{tpu_custom_call.1} parent=1 // pred_region
      %s789 = ssub.s32 256, 256
      %790 = vsyncadd [#allocation4], %s789
      %s791 = sshll.u32 [#allocation10], 4
      %s792 = int_to_ptr.vmem [resolvable:$true] %s791
      %797 = dma.vmem_to_hbm [thread:$0]  %s792, 256, %s5, [#allocation4], 128, 128, 8
    $region41: #{tpu_custom_call.1} parent=1 // pred_fallthru
      _
    // Predicated region
    $region42: #{tpu_custom_call.1} parent=1 // pred_check
      _
    $region43: #{tpu_custom_call.1} parent=1 // pred_check_branch
      %799 = sbr.rel (0) target = $region45
    $region44: #{tpu_custom_call.1} parent=1 // pred_region
      %800 = dma.done [#allocation4], 256
    $region45: #{tpu_custom_call.1} parent=1 // pred_fallthru
      _
    %801 = vsyncpa [#allocation3], 1
    %802 = vsyncpa [#allocation6], 1
    %803 = vsyncpa [#allocation9], 1
    %804 = vsyncpa [#allocation4], 1

</llo_original>
